<compile_context>
chip_gen: v6e
topology: v6e:2x2x1
jax: 0.10.0
libtpu: 0.0.40
codegen_flags: <defaults>
</compile_context>

<pallas_src>
import math
import functools

import numpy as np
import jax
import jax.numpy as jnp
from jax import lax
from jax.experimental import pallas as pl
from jax.experimental.pallas import tpu as pltpu


CONFIG = dict(
    vocab_size=128,
    nn_embed=32,
    num_hidden_layers=2,
    num_attention_heads=4,
    num_key_value_heads=2,
    ffn_intermediate_size=64,
    max_sequence_len=64,
    rms_norm_eps=1e-5,
    init_method_std=0.02,
    rope_theta=10000.0,
)


# ----------------------------- kernel helpers --------------------------------

def _rms(x, eps):
    return x * lax.rsqrt(jnp.mean(x * x, axis=-1, keepdims=True) + eps)


def _swap_halves(x):
    """[a | b] -> [b | a] along the last (head_dim) axis; the rotate-half sign is
    folded into the sin table, so no negation is needed here."""
    half = x.shape[-1] // 2
    return jnp.concatenate([x[..., half:], x[..., :half]], axis=-1)


# ----------------------------- main decoder kernel ---------------------------

def _decoder_kernel(
    # inputs
    x_ref,        # [B*S, D]   embedded tokens (read at layer 0 only)
    cos_ref,      # [S, Dh]    rotary cos, half-split layout
    sin_ref,      # [S, Dh]    rotary sin, half-split layout, rotate-half sign folded in
    attn_n_ref,   # [1, 1, D]
    ffn_n_ref,    # [1, 1, D]
    wqkv_ref,     # [1, D, (H+2*Hkv)*Dh]   fused QKV (scale + rope permutation folded)
    wo_ref,       # [1, D, D]
    wgu_ref,      # [1, D, 2F]             fused gate|up
    wd_ref,       # [1, F, D]
    fin_n_ref,    # [1, D]
    # outputs
    hid_ref,      # [B*S, D]   final-normed hidden state (written on last layer)
    # scratch
    res_ref,      # VMEM [B*S, D] residual stream, carried across the layer axis
    *, batch, seq, num_heads, num_kv_heads, head_dim, ffn_dim, eps,
):
    layer = pl.program_id(0)

    @pl.when(layer == 0)
    def _init():
        res_ref[...] = x_ref[...]

    x = res_ref[...]                                   # [B*S, D]
    B, S, H, Hkv, Dh = batch, seq, num_heads, num_kv_heads, head_dim
    G = H // Hkv
    Cq, Ck = H * Dh, Hkv * Dh

    # ---------------- attention block ----------------
    h = _rms(x, eps) * attn_n_ref[0]
    qkv = jnp.dot(h, wqkv_ref[0], preferred_element_type=jnp.float32)  # [B*S, Cq+2Ck]

    # Assemble head-major stacks (pure slice/stack data movement); the GQA group is
    # folded into the query rows so K/V are never repeated.
    q_parts, k_parts, v_parts = [], [], []
    for b in range(B):
        rows = slice(b * S, (b + 1) * S)
        for j in range(Hkv):
            q_parts.append(jnp.concatenate(
                [qkv[rows, (j * G + g) * Dh:(j * G + g + 1) * Dh] for g in range(G)],
                axis=0))                                                   # [G*S, Dh]
            k_parts.append(qkv[rows, Cq + j * Dh:Cq + (j + 1) * Dh])       # [S, Dh]
            v_parts.append(qkv[rows, Cq + Ck + j * Dh:Cq + Ck + (j + 1) * Dh])
    q3 = jnp.stack(q_parts, axis=0)                    # [B*Hkv, G*S, Dh]
    k3 = jnp.stack(k_parts, axis=0)                    # [B*Hkv, S,   Dh]
    v3 = jnp.stack(v_parts, axis=0)                    # [B*Hkv, S,   Dh]

    # rotary: x*cos + swap_halves(x)*sin_signed  (half-split layout; all batched)
    cos = cos_ref[...]
    sin = sin_ref[...]
    cos_q = jnp.tile(cos, (G, 1))[None]                # [1, G*S, Dh]
    sin_q = jnp.tile(sin, (G, 1))[None]
    q3 = q3 * cos_q + _swap_halves(q3) * sin_q
    k3 = k3 * cos[None] + _swap_halves(k3) * sin[None]

    # batched scores + causal softmax (1/sqrt(Dh) folded into Wq at prepare time)
    s = jnp.einsum('zqd,zkd->zqk', q3, k3, preferred_element_type=jnp.float32)
    q_pos = jnp.tile(lax.broadcasted_iota(jnp.int32, (S, S), 0), (G, 1))   # [G*S, S]
    k_pos = lax.broadcasted_iota(jnp.int32, (G * S, S), 1)
    s = jnp.where(k_pos <= q_pos, s, -1e30)
    m = jnp.max(s, axis=-1, keepdims=True)
    p = jnp.exp(s - m)
    attn = p * pl.reciprocal(jnp.sum(p, axis=-1, keepdims=True), approx=True)
    o3 = jnp.einsum('zqk,zkd->zqd', attn, v3, preferred_element_type=jnp.float32)

    # reassemble [B*S, D] (head-major) and apply the o-projection in one wide matmul
    out_rows = []
    for b in range(B):
        heads = [o3[b * Hkv + hh // G, (hh % G) * S:(hh % G + 1) * S, :]
                 for hh in range(H)]
        out_rows.append(jnp.concatenate(heads, axis=-1))                   # [S, D]
    attn_out = jnp.concatenate(out_rows, axis=0)                           # [B*S, D]
    x = x + jnp.dot(attn_out, wo_ref[0], preferred_element_type=jnp.float32)

    # ---------------- FFN block (SwiGLU, gate/up fused) ----------------
    h2 = _rms(x, eps) * ffn_n_ref[0]
    gu = jnp.dot(h2, wgu_ref[0], preferred_element_type=jnp.float32)       # [B*S, 2F]
    g = gu[:, :ffn_dim]
    u = gu[:, ffn_dim:]
    x = x + jnp.dot(g * jax.nn.sigmoid(g) * u, wd_ref[0],
                    preferred_element_type=jnp.float32)

    res_ref[...] = x                                   # carry to next layer

    @pl.when(layer == pl.num_programs(0) - 1)
    def _final():
        hid_ref[...] = _rms(x, eps) * fin_n_ref[...]


# ----------------------------- lm_head kernel (V-tiled) ----------------------

def _lm_head_kernel(h_ref, w_ref, o_ref):
    o_ref[...] = jnp.dot(h_ref[...], w_ref[...], preferred_element_type=jnp.float32)


# ------------------------------- params --------------------------------------

def init_params(key, cfg):
    std = cfg["init_method_std"]
    D = cfg["nn_embed"]
    H = cfg["num_attention_heads"]
    Hkv = cfg["num_key_value_heads"]
    Dh = D // H
    F = cfg["ffn_intermediate_size"]
    V = cfg["vocab_size"]
    L = cfg["num_hidden_layers"]

    keys = iter(jax.random.split(key, 1 + L * 7))

    def lin(k, din, dout):   # torch Linear weight is [out, in]; store transposed [in, out]
        return (jax.random.normal(k, (dout, din), jnp.float32) * std).T

    emb = jax.random.normal(next(keys), (V, D), jnp.float32) * std
    layers = []
    for _ in range(L):
        layers.append(dict(
            attn_norm=jnp.ones((D,), jnp.float32),
            ffn_norm=jnp.ones((D,), jnp.float32),
            wq=lin(next(keys), D, H * Dh),
            wk=lin(next(keys), D, Hkv * Dh),
            wv=lin(next(keys), D, Hkv * Dh),
            wo=lin(next(keys), D, D),
            wg=lin(next(keys), D, F),
            wu=lin(next(keys), D, F),
            wd=lin(next(keys), F, D),
        ))
    return dict(embedding=emb, final_norm=jnp.ones((D,), jnp.float32), layers=layers)


def prepare_params(params, cfg):
    """One-time layout prep: stack layers, fuse QKV and gate/up, permute Wq/Wk columns
    (interleaved rotary pairs -> half-split; scores are invariant to a shared head_dim
    permutation of q and k), fold the attention scale into Wq, pre-transpose the tied
    lm_head, and precompute half-split rotary tables with the rotate-half sign folded
    into sin."""
    D = cfg["nn_embed"]
    H = cfg["num_attention_heads"]
    Hkv = cfg["num_key_value_heads"]
    Dh = D // H
    L = cfg["num_hidden_layers"]
    S_max = cfg["max_sequence_len"]
    base = cfg.get("rope_theta", 10000.0)
    scale = 1.0 / math.sqrt(Dh)

    perm_head = np.concatenate([np.arange(0, Dh, 2), np.arange(1, Dh, 2)])

    def permute_cols(w, n_heads):
        cols = np.concatenate([hh * Dh + perm_head for hh in range(n_heads)])
        return np.asarray(w)[:, cols]

    wqkv, wo, wgu, wd, attn_n, ffn_n = [], [], [], [], [], []
    for lyr in params["layers"]:
        wq = permute_cols(lyr["wq"], H) * scale          # fold 1/sqrt(Dh) into Wq
        wk = permute_cols(lyr["wk"], Hkv)
        wqkv.append(np.concatenate([wq, wk, np.asarray(lyr["wv"])], axis=1))
        wo.append(np.asarray(lyr["wo"]))
        wgu.append(np.concatenate([np.asarray(lyr["wg"]), np.asarray(lyr["wu"])], axis=1))
        wd.append(np.asarray(lyr["wd"]))
        attn_n.append(np.asarray(lyr["attn_norm"]))
        ffn_n.append(np.asarray(lyr["ffn_norm"]))

    pos = np.arange(S_max, dtype=np.float32)[:, None]
    inv = np.exp(np.arange(0, Dh, 2, dtype=np.float32) * (-math.log(base) / Dh))
    ang = pos * inv                                      # [S_max, Dh//2]
    cos_tab = np.concatenate([np.cos(ang), np.cos(ang)], axis=-1).astype(np.float32)
    sin_tab = np.concatenate([-np.sin(ang), np.sin(ang)], axis=-1).astype(np.float32)

    emb = np.asarray(params["embedding"], np.float32)
    return dict(
        embedding=jnp.asarray(emb),                      # [V, D] for the token gather
        lm_head=jnp.asarray(np.ascontiguousarray(emb.T)),  # [D, V] tied head
        final_norm=jnp.asarray(np.asarray(params["final_norm"]).reshape(1, D)),
        attn_norm=jnp.asarray(np.stack(attn_n).reshape(L, 1, D)),
        ffn_norm=jnp.asarray(np.stack(ffn_n).reshape(L, 1, D)),
        wqkv=jnp.asarray(np.stack(wqkv)),                # [L, D, (H+2Hkv)*Dh]
        wo=jnp.asarray(np.stack(wo)),                    # [L, D, D]
        wgu=jnp.asarray(np.stack(wgu)),                  # [L, D, 2F]
        wd=jnp.asarray(np.stack(wd)),                    # [L, F, D]
        cos=jnp.asarray(cos_tab),                        # [S_max, Dh]
        sin=jnp.asarray(sin_tab),                        # [S_max, Dh]
    )


# ------------------------------- forward --------------------------------------

def smollm2_forward(prepared, tokens, cfg):
    B, S = tokens.shape
    D = cfg["nn_embed"]
    H = cfg["num_attention_heads"]
    Hkv = cfg["num_key_value_heads"]
    Dh = D // H
    F = cfg["ffn_intermediate_size"]
    L = cfg["num_hidden_layers"]
    V = cfg["vocab_size"]
    Cqkv = (H + 2 * Hkv) * Dh
    BS = B * S
    eps = cfg["rms_norm_eps"]

    x_emb = prepared["embedding"][tokens].reshape(BS, D)    # token gather (glue)
    cos = prepared["cos"][:S]
    sin = prepared["sin"][:S]

    kernel = functools.partial(
        _decoder_kernel, batch=B, seq=S, num_heads=H, num_kv_heads=Hkv,
        head_dim=Dh, ffn_dim=F, eps=eps)

    hidden = pl.pallas_call(
        kernel,
        out_shape=jax.ShapeDtypeStruct((BS, D), jnp.float32),
        grid_spec=pltpu.PrefetchScalarGridSpec(
            num_scalar_prefetch=0,
            grid=(L,),                                   # layers only: weights read once
            in_specs=[
                pl.BlockSpec((BS, D), lambda l: (0, 0)),            # x_emb
                pl.BlockSpec((S, Dh), lambda l: (0, 0)),            # cos
                pl.BlockSpec((S, Dh), lambda l: (0, 0)),            # sin (signed)
                pl.BlockSpec((1, 1, D), lambda l: (l, 0, 0)),       # attn_norm
                pl.BlockSpec((1, 1, D), lambda l: (l, 0, 0)),       # ffn_norm
                pl.BlockSpec((1, D, Cqkv), lambda l: (l, 0, 0)),    # fused wqkv
                pl.BlockSpec((1, D, D), lambda l: (l, 0, 0)),       # wo
                pl.BlockSpec((1, D, 2 * F), lambda l: (l, 0, 0)),   # fused gate|up
                pl.BlockSpec((1, F, D), lambda l: (l, 0, 0)),       # wd
                pl.BlockSpec((1, D), lambda l: (0, 0)),             # final_norm
            ],
            out_specs=pl.BlockSpec((BS, D), lambda l: (0, 0)),
            scratch_shapes=[pltpu.VMEM((BS, D), jnp.float32)],
        ),
        compiler_params=pltpu.CompilerParams(
            dimension_semantics=("arbitrary",),
            vmem_limit_bytes=32 * 1024 * 1024),
    )(x_emb, cos, sin,
      prepared["attn_norm"], prepared["ffn_norm"],
      prepared["wqkv"], prepared["wo"], prepared["wgu"], prepared["wd"],
      prepared["final_norm"])

    # Tied lm_head as a separate call tiled over the vocab dimension: lane-dense
    # logits blocks and a parallel axis; keeps the head VMEM-resident at real V.
    TV = V if V <= 2048 else 2048
    assert V % TV == 0
    logits = pl.pallas_call(
        _lm_head_kernel,
        out_shape=jax.ShapeDtypeStruct((BS, V), jnp.float32),
        grid_spec=pltpu.PrefetchScalarGridSpec(
            num_scalar_prefetch=0,
            grid=(V // TV,),
            in_specs=[
                pl.BlockSpec((BS, D), lambda j: (0, 0)),
                pl.BlockSpec((D, TV), lambda j: (0, j)),
            ],
            out_specs=pl.BlockSpec((BS, TV), lambda j: (0, j)),
        ),
        compiler_params=pltpu.CompilerParams(
            dimension_semantics=("parallel",),
            vmem_limit_bytes=32 * 1024 * 1024),
    )(hidden, prepared["lm_head"])

    return logits.reshape(B, S, V)


# ------------------------------- main -----------------------------------------

if __name__ == "__main__":
    key = jax.random.PRNGKey(0)
    pkey, tkey = jax.random.split(key)

    params = init_params(pkey, CONFIG)
    prepared = prepare_params(params, CONFIG)

    B, S = 2, 8
    tokens = jax.random.randint(tkey, (B, S), 0, CONFIG["vocab_size"], dtype=jnp.int32)

    fwd = jax.jit(functools.partial(smollm2_forward, cfg=CONFIG))
    logits = jax.block_until_ready(fwd(prepared, tokens))

    assert logits.shape == (B, S, CONFIG["vocab_size"])
    assert bool(jnp.all(jnp.isfinite(logits)))
    print("KERNEL_OK")
</pallas_src>

<mosaic_0001>
module attributes {stable_mosaic.version = 11 : i64} {
  func.func @_lm_head_kernel(%arg0: i32, %arg1: memref<16x32xf32, #tpu.memory_space<vmem>>, %arg2: memref<32x128xf32, #tpu.memory_space<vmem>>, %arg3: memref<16x128xf32, #tpu.memory_space<vmem>>) attributes {dimension_semantics = [#tpu.dimension_semantics<parallel>], iteration_bounds = array<i64: 1>, scalar_prefetch = 0 : i64, scratch_operands = 0 : i64, tpu.core_type = #tpu.core_type<tc>, window_params = [{pipeline_mode = #tpu.pipeline_mode<synchronous>, transform_indices = @transform_0, window_bounds = array<i64: 16, 32>}, {transform_indices = @transform_1, window_bounds = array<i64: 32, 128>}, {transform_indices = @transform_2, window_bounds = array<i64: 16, 128>}]} {
    %c0 = arith.constant 0 : index
    %c0_0 = arith.constant 0 : index
    %0 = vector.load %arg1[%c0, %c0_0] : memref<16x32xf32, #tpu.memory_space<vmem>>, vector<16x32xf32>
    %c0_1 = arith.constant 0 : index
    %c0_2 = arith.constant 0 : index
    %1 = vector.load %arg2[%c0_1, %c0_2] : memref<32x128xf32, #tpu.memory_space<vmem>>, vector<32x128xf32>
    %cst = arith.constant dense<0.000000e+00> : vector<16x128xf32>
    %2 = tpu.matmul %0, %1, %cst {dimension_numbers = #tpu.dot_dimension_numbers<[1], [0], [0], [1], [0, 0, 1, 1], [], []>} : vector<16x32xf32>, vector<32x128xf32>, vector<16x128xf32> -> vector<16x128xf32>
    %c0_3 = arith.constant 0 : index
    %c0_4 = arith.constant 0 : index
    %3 = vector.load %arg3[%c0_3, %c0_4] : memref<16x128xf32, #tpu.memory_space<vmem>>, vector<16x128xf32>
    tpu.vector_store %arg3[%c0_3, %c0_4], %2 {strides = array<i32>} : memref<16x128xf32, #tpu.memory_space<vmem>>, vector<16x128xf32>,
    return
  }
  func.func @transform_0(%arg0: i32) -> (i32, i32) {
    %c0_i32 = arith.constant 0 : i32
    %c0_i32_0 = arith.constant 0 : i32
    %c0_i32_1 = arith.constant 0 : i32
    return %c0_i32, %c0_i32_0 : i32, i32
  }
  func.func @transform_1(%arg0: i32) -> (i32, i32) {
    %c0_i32 = arith.constant 0 : i32
    %c0_i32_0 = arith.constant 0 : i32
    return %c0_i32, %arg0 : i32, i32
  }
  func.func @transform_2(%arg0: i32) -> (i32, i32) {
    %c0_i32 = arith.constant 0 : i32
    %c0_i32_0 = arith.constant 0 : i32
    return %c0_i32, %arg0 : i32, i32
  }
}

module attributes {stable_mosaic.version = 11 : i64} {
  func.func @_decoder_kernel(%arg0: i32, %arg1: memref<16x32xf32, #tpu.memory_space<vmem>>, %arg2: memref<8x8xf32, #tpu.memory_space<vmem>>, %arg3: memref<8x8xf32, #tpu.memory_space<vmem>>, %arg4: memref<1x1x32xf32, #tpu.memory_space<vmem>>, %arg5: memref<1x1x32xf32, #tpu.memory_space<vmem>>, %arg6: memref<1x32x64xf32, #tpu.memory_space<vmem>>, %arg7: memref<1x32x32xf32, #tpu.memory_space<vmem>>, %arg8: memref<1x32x128xf32, #tpu.memory_space<vmem>>, %arg9: memref<1x64x32xf32, #tpu.memory_space<vmem>>, %arg10: memref<1x32xf32, #tpu.memory_space<vmem>>, %arg11: memref<16x32xf32, #tpu.memory_space<vmem>>, %arg12: memref<16x32xf32, #tpu.memory_space<vmem>>) attributes {dimension_semantics = [#tpu.dimension_semantics<arbitrary>], iteration_bounds = array<i64: 2>, scalar_prefetch = 0 : i64, scratch_operands = 1 : i64, tpu.core_type = #tpu.core_type<tc>, window_params = [{pipeline_mode = #tpu.pipeline_mode<synchronous>, transform_indices = @transform_0, window_bounds = array<i64: 16, 32>}, {pipeline_mode = #tpu.pipeline_mode<synchronous>, transform_indices = @transform_1, window_bounds = array<i64: 8, 8>}, {pipeline_mode = #tpu.pipeline_mode<synchronous>, transform_indices = @transform_2, window_bounds = array<i64: 8, 8>}, {transform_indices = @transform_3, window_bounds = array<i64: 1, 1, 32>}, {transform_indices = @transform_4, window_bounds = array<i64: 1, 1, 32>}, {transform_indices = @transform_5, window_bounds = array<i64: 1, 32, 64>}, {transform_indices = @transform_6, window_bounds = array<i64: 1, 32, 32>}, {transform_indices = @transform_7, window_bounds = array<i64: 1, 32, 128>}, {transform_indices = @transform_8, window_bounds = array<i64: 1, 64, 32>}, {pipeline_mode = #tpu.pipeline_mode<synchronous>, transform_indices = @transform_9, window_bounds = array<i64: 1, 32>}, {pipeline_mode = #tpu.pipeline_mode<synchronous>, transform_indices = @transform_10, window_bounds = array<i64: 16, 32>}]} {
    %c0_i32 = arith.constant 0 : i32
    %0 = arith.cmpi eq, %arg0, %c0_i32 : i32
    %1 = arith.extui %0 : i1 to i32
    %c0_i32_0 = arith.constant 0 : i32
    %2 = arith.cmpi ne, %1, %c0_i32_0 : i32
    scf.if %2 {
      %c0_42 = arith.constant 0 : index
      %c0_43 = arith.constant 0 : index
      %157 = vector.load %arg1[%c0_42, %c0_43] : memref<16x32xf32, #tpu.memory_space<vmem>>, vector<16x32xf32>
      %c0_44 = arith.constant 0 : index
      %c0_45 = arith.constant 0 : index
      %158 = vector.load %arg12[%c0_44, %c0_45] : memref<16x32xf32, #tpu.memory_space<vmem>>, vector<16x32xf32>
      tpu.vector_store %arg12[%c0_44, %c0_45], %157 {strides = array<i32>} : memref<16x32xf32, #tpu.memory_space<vmem>>, vector<16x32xf32>,
    } else {
    }
    %c0 = arith.constant 0 : index
    %c0_1 = arith.constant 0 : index
    %3 = vector.load %arg12[%c0, %c0_1] : memref<16x32xf32, #tpu.memory_space<vmem>>, vector<16x32xf32>
    %4 = arith.mulf %3, %3 : vector<16x32xf32>
    %cst = arith.constant dense<0.000000e+00> : vector<16xf32>
    %5 = vector.multi_reduction <add>, %4, %cst [1] : vector<16x32xf32> to vector<16xf32>
    %6 = vector.shape_cast %5 : vector<16xf32> to vector<16x1xf32>
    %cst_2 = arith.constant 3.200000e+01 : f32
    %7 = vector.broadcast %cst_2 : f32 to vector<16x1xf32>
    %8 = arith.divf %6, %7 : vector<16x1xf32>
    %cst_3 = arith.constant 9.99999974E-6 : f32
    %9 = vector.broadcast %cst_3 : f32 to vector<16x1xf32>
    %10 = arith.addf %8, %9 : vector<16x1xf32>
    %11 = math.rsqrt %10 : vector<16x1xf32>
    %12 = vector.broadcast %11 : vector<16x1xf32> to vector<16x32xf32>
    %13 = arith.mulf %3, %12 : vector<16x32xf32>
    %c0_4 = arith.constant 0 : index
    %c0_5 = arith.constant 0 : index
    %c0_6 = arith.constant 0 : index
    %14 = vector.load %arg4[%c0_4, %c0_5, %c0_6] : memref<1x1x32xf32, #tpu.memory_space<vmem>>, vector<1x1x32xf32>
    %15 = vector.shape_cast %14 : vector<1x1x32xf32> to vector<1x32xf32>
    %16 = vector.broadcast %15 : vector<1x32xf32> to vector<16x32xf32>
    %17 = arith.mulf %13, %16 : vector<16x32xf32>
    %c0_7 = arith.constant 0 : index
    %c0_8 = arith.constant 0 : index
    %c0_9 = arith.constant 0 : index
    %18 = vector.load %arg6[%c0_7, %c0_8, %c0_9] : memref<1x32x64xf32, #tpu.memory_space<vmem>>, vector<1x32x64xf32>
    %19 = vector.shape_cast %18 : vector<1x32x64xf32> to vector<32x64xf32>
    %cst_10 = arith.constant dense<0.000000e+00> : vector<16x64xf32>
    %20 = tpu.matmul %17, %19, %cst_10 {dimension_numbers = #tpu.dot_dimension_numbers<[1], [0], [0], [1], [0, 0, 1, 1], [], []>} : vector<16x32xf32>, vector<32x64xf32>, vector<16x64xf32> -> vector<16x64xf32>
    %21 = vector.extract_strided_slice %20 {offsets = [0, 0], sizes = [8, 8], strides = [1, 1]} : vector<16x64xf32> to vector<8x8xf32>
    %22 = vector.extract_strided_slice %20 {offsets = [0, 8], sizes = [8, 8], strides = [1, 1]} : vector<16x64xf32> to vector<8x8xf32>
    %23 = tpu.concatenate %21, %22 in 0 : vector<8x8xf32>, vector<8x8xf32> -> vector<16x8xf32>
    %24 = vector.extract_strided_slice %20 {offsets = [0, 32], sizes = [8, 8], strides = [1, 1]} : vector<16x64xf32> to vector<8x8xf32>
    %25 = vector.extract_strided_slice %20 {offsets = [0, 48], sizes = [8, 8], strides = [1, 1]} : vector<16x64xf32> to vector<8x8xf32>
    %26 = vector.extract_strided_slice %20 {offsets = [0, 16], sizes = [8, 8], strides = [1, 1]} : vector<16x64xf32> to vector<8x8xf32>
    %27 = vector.extract_strided_slice %20 {offsets = [0, 24], sizes = [8, 8], strides = [1, 1]} : vector<16x64xf32> to vector<8x8xf32>
    %28 = tpu.concatenate %26, %27 in 0 : vector<8x8xf32>, vector<8x8xf32> -> vector<16x8xf32>
    %29 = vector.extract_strided_slice %20 {offsets = [0, 40], sizes = [8, 8], strides = [1, 1]} : vector<16x64xf32> to vector<8x8xf32>
    %30 = vector.extract_strided_slice %20 {offsets = [0, 56], sizes = [8, 8], strides = [1, 1]} : vector<16x64xf32> to vector<8x8xf32>
    %31 = vector.extract_strided_slice %20 {offsets = [8, 0], sizes = [8, 8], strides = [1, 1]} : vector<16x64xf32> to vector<8x8xf32>
    %32 = vector.extract_strided_slice %20 {offsets = [8, 8], sizes = [8, 8], strides = [1, 1]} : vector<16x64xf32> to vector<8x8xf32>
    %33 = tpu.concatenate %31, %32 in 0 : vector<8x8xf32>, vector<8x8xf32> -> vector<16x8xf32>
    %34 = vector.extract_strided_slice %20 {offsets = [8, 32], sizes = [8, 8], strides = [1, 1]} : vector<16x64xf32> to vector<8x8xf32>
    %35 = vector.extract_strided_slice %20 {offsets = [8, 48], sizes = [8, 8], strides = [1, 1]} : vector<16x64xf32> to vector<8x8xf32>
    %36 = vector.extract_strided_slice %20 {offsets = [8, 16], sizes = [8, 8], strides = [1, 1]} : vector<16x64xf32> to vector<8x8xf32>
    %37 = vector.extract_strided_slice %20 {offsets = [8, 24], sizes = [8, 8], strides = [1, 1]} : vector<16x64xf32> to vector<8x8xf32>
    %38 = tpu.concatenate %36, %37 in 0 : vector<8x8xf32>, vector<8x8xf32> -> vector<16x8xf32>
    %39 = vector.extract_strided_slice %20 {offsets = [8, 40], sizes = [8, 8], strides = [1, 1]} : vector<16x64xf32> to vector<8x8xf32>
    %40 = vector.extract_strided_slice %20 {offsets = [8, 56], sizes = [8, 8], strides = [1, 1]} : vector<16x64xf32> to vector<8x8xf32>
    %41 = vector.shape_cast %23 : vector<16x8xf32> to vector<1x16x8xf32>
    %42 = vector.shape_cast %28 : vector<16x8xf32> to vector<1x16x8xf32>
    %43 = vector.shape_cast %33 : vector<16x8xf32> to vector<1x16x8xf32>
    %44 = vector.shape_cast %38 : vector<16x8xf32> to vector<1x16x8xf32>
    %45 = tpu.concatenate %41, %42, %43, %44 in 0 : vector<1x16x8xf32>, vector<1x16x8xf32>, vector<1x16x8xf32>, vector<1x16x8xf32> -> vector<4x16x8xf32>
    %46 = vector.shape_cast %24 : vector<8x8xf32> to vector<1x8x8xf32>
    %47 = vector.shape_cast %29 : vector<8x8xf32> to vector<1x8x8xf32>
    %48 = vector.shape_cast %34 : vector<8x8xf32> to vector<1x8x8xf32>
    %49 = vector.shape_cast %39 : vector<8x8xf32> to vector<1x8x8xf32>
    %50 = tpu.concatenate %46, %47, %48, %49 in 0 : vector<1x8x8xf32>, vector<1x8x8xf32>, vector<1x8x8xf32>, vector<1x8x8xf32> -> vector<4x8x8xf32>
    %51 = vector.shape_cast %25 : vector<8x8xf32> to vector<1x8x8xf32>
    %52 = vector.shape_cast %30 : vector<8x8xf32> to vector<1x8x8xf32>
    %53 = vector.shape_cast %35 : vector<8x8xf32> to vector<1x8x8xf32>
    %54 = vector.shape_cast %40 : vector<8x8xf32> to vector<1x8x8xf32>
    %55 = tpu.concatenate %51, %52, %53, %54 in 0 : vector<1x8x8xf32>, vector<1x8x8xf32>, vector<1x8x8xf32>, vector<1x8x8xf32> -> vector<4x8x8xf32>
    %c0_11 = arith.constant 0 : index
    %c0_12 = arith.constant 0 : index
    %56 = vector.load %arg2[%c0_11, %c0_12] : memref<8x8xf32, #tpu.memory_space<vmem>>, vector<8x8xf32>
    %c0_13 = arith.constant 0 : index
    %c0_14 = arith.constant 0 : index
    %57 = vector.load %arg3[%c0_13, %c0_14] : memref<8x8xf32, #tpu.memory_space<vmem>>, vector<8x8xf32>
    %58 = tpu.concatenate %56, %56 in 0 : vector<8x8xf32>, vector<8x8xf32> -> vector<16x8xf32>
    %59 = vector.shape_cast %58 : vector<16x8xf32> to vector<1x16x8xf32>
    %60 = tpu.concatenate %57, %57 in 0 : vector<8x8xf32>, vector<8x8xf32> -> vector<16x8xf32>
    %61 = vector.shape_cast %60 : vector<16x8xf32> to vector<1x16x8xf32>
    %62 = vector.broadcast %59 : vector<1x16x8xf32> to vector<4x16x8xf32>
    %63 = arith.mulf %45, %62 : vector<4x16x8xf32>
    %64 = vector.extract_strided_slice %45 {offsets = [0, 0, 4], sizes = [4, 16, 4], strides = [1, 1, 1]} : vector<4x16x8xf32> to vector<4x16x4xf32>
    %65 = vector.extract_strided_slice %45 {offsets = [0, 0, 0], sizes = [4, 16, 4], strides = [1, 1, 1]} : vector<4x16x8xf32> to vector<4x16x4xf32>
    %66 = tpu.concatenate %64, %65 in 2 : vector<4x16x4xf32>, vector<4x16x4xf32> -> vector<4x16x8xf32>
    %67 = vector.broadcast %61 : vector<1x16x8xf32> to vector<4x16x8xf32>
    %68 = arith.mulf %66, %67 : vector<4x16x8xf32>
    %69 = arith.addf %63, %68 : vector<4x16x8xf32>
    %70 = vector.shape_cast %56 : vector<8x8xf32> to vector<1x8x8xf32>
    %71 = vector.broadcast %70 : vector<1x8x8xf32> to vector<4x8x8xf32>
    %72 = arith.mulf %50, %71 : vector<4x8x8xf32>
    %73 = vector.extract_strided_slice %50 {offsets = [0, 0, 4], sizes = [4, 8, 4], strides = [1, 1, 1]} : vector<4x8x8xf32> to vector<4x8x4xf32>
    %74 = vector.extract_strided_slice %50 {offsets = [0, 0, 0], sizes = [4, 8, 4], strides = [1, 1, 1]} : vector<4x8x8xf32> to vector<4x8x4xf32>
    %75 = tpu.concatenate %73, %74 in 2 : vector<4x8x4xf32>, vector<4x8x4xf32> -> vector<4x8x8xf32>
    %76 = vector.shape_cast %57 : vector<8x8xf32> to vector<1x8x8xf32>
    %77 = vector.broadcast %76 : vector<1x8x8xf32> to vector<4x8x8xf32>
    %78 = arith.mulf %75, %77 : vector<4x8x8xf32>
    %79 = arith.addf %72, %78 : vector<4x8x8xf32>
    "tpu.trace_start"() <{level = 10 : i32, message = "zqd,zkd->zqk"}> : () -> ()
    %cst_15 = arith.constant dense<0.000000e+00> : vector<4x16x8xf32>
    %80 = tpu.matmul %69, %79, %cst_15 {dimension_numbers = #tpu.dot_dimension_numbers<[2], [2], [1], [1], [0, 0, 0, 1, 1, 1], [0], [0]>} : vector<4x16x8xf32>, vector<4x8x8xf32>, vector<4x16x8xf32> -> vector<4x16x8xf32>
    "tpu.trace_stop"() : () -> ()
    %81 = tpu.iota {dimensions = array<i32: 0>} : vector<8x8xi32>
    %82 = tpu.concatenate %81, %81 in 0 : vector<8x8xi32>, vector<8x8xi32> -> vector<16x8xi32>
    %83 = tpu.iota {dimensions = array<i32: 1>} : vector<16x8xi32>
    %84 = arith.cmpi sle, %83, %82 : vector<16x8xi32>
    %cst_16 = arith.constant -1.000000e+30 : f32
    %85 = vector.shape_cast %84 : vector<16x8xi1> to vector<1x16x8xi1>
    %86 = vector.broadcast %85 : vector<1x16x8xi1> to vector<4x16x8xi1>
    %87 = vector.broadcast %cst_16 : f32 to vector<4x16x8xf32>
    %88 = arith.select %86, %80, %87 : vector<4x16x8xi1>, vector<4x16x8xf32>
    %cst_17 = arith.constant dense<0xFF800000> : vector<4x16xf32>
    %89 = vector.multi_reduction <maximumf>, %88, %cst_17 [2] : vector<4x16x8xf32> to vector<4x16xf32>
    %90 = vector.shape_cast %89 : vector<4x16xf32> to vector<4x16x1xf32>
    %91 = vector.broadcast %90 : vector<4x16x1xf32> to vector<4x16x8xf32>
    %92 = arith.subf %88, %91 : vector<4x16x8xf32>
    %93 = math.exp %92 : vector<4x16x8xf32>
    %cst_18 = arith.constant dense<0.000000e+00> : vector<4x16xf32>
    %94 = vector.multi_reduction <add>, %93, %cst_18 [2] : vector<4x16x8xf32> to vector<4x16xf32>
    %95 = vector.shape_cast %94 : vector<4x16xf32> to vector<4x16x1xf32>
    %96 = tpu.reciprocal %95 {approx = true} : vector<4x16x1xf32> -> vector<4x16x1xf32>
    %97 = vector.broadcast %96 : vector<4x16x1xf32> to vector<4x16x8xf32>
    %98 = arith.mulf %93, %97 : vector<4x16x8xf32>
    "tpu.trace_start"() <{level = 10 : i32, message = "zqk,zkd->zqd"}> : () -> ()
    %cst_19 = arith.constant dense<0.000000e+00> : vector<4x16x8xf32>
    %99 = tpu.matmul %98, %55, %cst_19 {dimension_numbers = #tpu.dot_dimension_numbers<[2], [1], [1], [2], [0, 0, 0, 1, 1, 2], [0], [0]>} : vector<4x16x8xf32>, vector<4x8x8xf32>, vector<4x16x8xf32> -> vector<4x16x8xf32>
    "tpu.trace_stop"() : () -> ()
    %100 = vector.extract_strided_slice %99 {offsets = [0, 0, 0], sizes = [1, 8, 8], strides = [1, 1, 1]} : vector<4x16x8xf32> to vector<1x8x8xf32>
    %101 = vector.shape_cast %100 : vector<1x8x8xf32> to vector<8x8xf32>
    %102 = vector.extract_strided_slice %99 {offsets = [0, 8, 0], sizes = [1, 8, 8], strides = [1, 1, 1]} : vector<4x16x8xf32> to vector<1x8x8xf32>
    %103 = vector.shape_cast %102 : vector<1x8x8xf32> to vector<8x8xf32>
    %104 = vector.extract_strided_slice %99 {offsets = [1, 0, 0], sizes = [1, 8, 8], strides = [1, 1, 1]} : vector<4x16x8xf32> to vector<1x8x8xf32>
    %105 = vector.shape_cast %104 : vector<1x8x8xf32> to vector<8x8xf32>
    %106 = vector.extract_strided_slice %99 {offsets = [1, 8, 0], sizes = [1, 8, 8], strides = [1, 1, 1]} : vector<4x16x8xf32> to vector<1x8x8xf32>
    %107 = vector.shape_cast %106 : vector<1x8x8xf32> to vector<8x8xf32>
    %108 = tpu.concatenate %101, %103, %105, %107 in 1 : vector<8x8xf32>, vector<8x8xf32>, vector<8x8xf32>, vector<8x8xf32> -> vector<8x32xf32>
    %109 = vector.extract_strided_slice %99 {offsets = [2, 0, 0], sizes = [1, 8, 8], strides = [1, 1, 1]} : vector<4x16x8xf32> to vector<1x8x8xf32>
    %110 = vector.shape_cast %109 : vector<1x8x8xf32> to vector<8x8xf32>
    %111 = vector.extract_strided_slice %99 {offsets = [2, 8, 0], sizes = [1, 8, 8], strides = [1, 1, 1]} : vector<4x16x8xf32> to vector<1x8x8xf32>
    %112 = vector.shape_cast %111 : vector<1x8x8xf32> to vector<8x8xf32>
    %113 = vector.extract_strided_slice %99 {offsets = [3, 0, 0], sizes = [1, 8, 8], strides = [1, 1, 1]} : vector<4x16x8xf32> to vector<1x8x8xf32>
    %114 = vector.shape_cast %113 : vector<1x8x8xf32> to vector<8x8xf32>
    %115 = vector.extract_strided_slice %99 {offsets = [3, 8, 0], sizes = [1, 8, 8], strides = [1, 1, 1]} : vector<4x16x8xf32> to vector<1x8x8xf32>
    %116 = vector.shape_cast %115 : vector<1x8x8xf32> to vector<8x8xf32>
    %117 = tpu.concatenate %110, %112, %114, %116 in 1 : vector<8x8xf32>, vector<8x8xf32>, vector<8x8xf32>, vector<8x8xf32> -> vector<8x32xf32>
    %118 = tpu.concatenate %108, %117 in 0 : vector<8x32xf32>, vector<8x32xf32> -> vector<16x32xf32>
    %c0_20 = arith.constant 0 : index
    %c0_21 = arith.constant 0 : index
    %c0_22 = arith.constant 0 : index
    %119 = vector.load %arg7[%c0_20, %c0_21, %c0_22] : memref<1x32x32xf32, #tpu.memory_space<vmem>>, vector<1x32x32xf32>
    %120 = vector.shape_cast %119 : vector<1x32x32xf32> to vector<32x32xf32>
    %cst_23 = arith.constant dense<0.000000e+00> : vector<16x32xf32>
    %121 = tpu.matmul %118, %120, %cst_23 {dimension_numbers = #tpu.dot_dimension_numbers<[1], [0], [0], [1], [0, 0, 1, 1], [], []>} : vector<16x32xf32>, vector<32x32xf32>, vector<16x32xf32> -> vector<16x32xf32>
    %122 = arith.addf %3, %121 : vector<16x32xf32>
    %123 = arith.mulf %122, %122 : vector<16x32xf32>
    %cst_24 = arith.constant dense<0.000000e+00> : vector<16xf32>
    %124 = vector.multi_reduction <add>, %123, %cst_24 [1] : vector<16x32xf32> to vector<16xf32>
    %125 = vector.shape_cast %124 : vector<16xf32> to vector<16x1xf32>
    %cst_25 = arith.constant 3.200000e+01 : f32
    %126 = vector.broadcast %cst_25 : f32 to vector<16x1xf32>
    %127 = arith.divf %125, %126 : vector<16x1xf32>
    %cst_26 = arith.constant 9.99999974E-6 : f32
    %128 = vector.broadcast %cst_26 : f32 to vector<16x1xf32>
    %129 = arith.addf %127, %128 : vector<16x1xf32>
    %130 = math.rsqrt %129 : vector<16x1xf32>
    %131 = vector.broadcast %130 : vector<16x1xf32> to vector<16x32xf32>
    %132 = arith.mulf %122, %131 : vector<16x32xf32>
    %c0_27 = arith.constant 0 : index
    %c0_28 = arith.constant 0 : index
    %c0_29 = arith.constant 0 : index
    %133 = vector.load %arg5[%c0_27, %c0_28, %c0_29] : memref<1x1x32xf32, #tpu.memory_space<vmem>>, vector<1x1x32xf32>
    %134 = vector.shape_cast %133 : vector<1x1x32xf32> to vector<1x32xf32>
    %135 = vector.broadcast %134 : vector<1x32xf32> to vector<16x32xf32>
    %136 = arith.mulf %132, %135 : vector<16x32xf32>
    %c0_30 = arith.constant 0 : index
    %c0_31 = arith.constant 0 : index
    %c0_32 = arith.constant 0 : index
    %137 = vector.load %arg8[%c0_30, %c0_31, %c0_32] : memref<1x32x128xf32, #tpu.memory_space<vmem>>, vector<1x32x128xf32>
    %138 = vector.shape_cast %137 : vector<1x32x128xf32> to vector<32x128xf32>
    %cst_33 = arith.constant dense<0.000000e+00> : vector<16x128xf32>
    %139 = tpu.matmul %136, %138, %cst_33 {dimension_numbers = #tpu.dot_dimension_numbers<[1], [0], [0], [1], [0, 0, 1, 1], [], []>} : vector<16x32xf32>, vector<32x128xf32>, vector<16x128xf32> -> vector<16x128xf32>
    %140 = vector.extract_strided_slice %139 {offsets = [0, 0], sizes = [16, 64], strides = [1, 1]} : vector<16x128xf32> to vector<16x64xf32>
    %141 = vector.extract_strided_slice %139 {offsets = [0, 64], sizes = [16, 64], strides = [1, 1]} : vector<16x128xf32> to vector<16x64xf32>
    %142 = arith.negf %140 : vector<16x64xf32>
    %143 = math.exp %142 : vector<16x64xf32>
    %cst_34 = arith.constant 1.000000e+00 : f32
    %144 = vector.broadcast %cst_34 : f32 to vector<16x64xf32>
    %145 = arith.addf %144, %143 : vector<16x64xf32>
    %146 = arith.divf %144, %145 : vector<16x64xf32>
    %147 = arith.mulf %140, %146 : vector<16x64xf32>
    %148 = arith.mulf %147, %141 : vector<16x64xf32>
    %c0_35 = arith.constant 0 : index
    %c0_36 = arith.constant 0 : index
    %c0_37 = arith.constant 0 : index
    %149 = vector.load %arg9[%c0_35, %c0_36, %c0_37] : memref<1x64x32xf32, #tpu.memory_space<vmem>>, vector<1x64x32xf32>
    %150 = vector.shape_cast %149 : vector<1x64x32xf32> to vector<64x32xf32>
    %cst_38 = arith.constant dense<0.000000e+00> : vector<16x32xf32>
    %151 = tpu.matmul %148, %150, %cst_38 {dimension_numbers = #tpu.dot_dimension_numbers<[1], [0], [0], [1], [0, 0, 1, 1], [], []>} : vector<16x64xf32>, vector<64x32xf32>, vector<16x32xf32> -> vector<16x32xf32>
    %152 = arith.addf %122, %151 : vector<16x32xf32>
    %c0_39 = arith.constant 0 : index
    %c0_40 = arith.constant 0 : index
    %153 = vector.load %arg12[%c0_39, %c0_40] : memref<16x32xf32, #tpu.memory_space<vmem>>, vector<16x32xf32>
    tpu.vector_store %arg12[%c0_39, %c0_40], %152 {strides = array<i32>} : memref<16x32xf32, #tpu.memory_space<vmem>>, vector<16x32xf32>,
    %c1_i32 = arith.constant 1 : i32
    %154 = arith.cmpi eq, %arg0, %c1_i32 : i32
    %155 = arith.extui %154 : i1 to i32
    %c0_i32_41 = arith.constant 0 : i32
    %156 = arith.cmpi ne, %155, %c0_i32_41 : i32
    scf.if %156 {
      %157 = arith.mulf %152, %152 : vector<16x32xf32>
      %cst_42 = arith.constant dense<0.000000e+00> : vector<16xf32>
      %158 = vector.multi_reduction <add>, %157, %cst_42 [1] : vector<16x32xf32> to vector<16xf32>
      %159 = vector.shape_cast %158 : vector<16xf32> to vector<16x1xf32>
      %cst_43 = arith.constant 3.200000e+01 : f32
      %160 = vector.broadcast %cst_43 : f32 to vector<16x1xf32>
      %161 = arith.divf %159, %160 : vector<16x1xf32>
      %cst_44 = arith.constant 9.99999974E-6 : f32
      %162 = vector.broadcast %cst_44 : f32 to vector<16x1xf32>
      %163 = arith.addf %161, %162 : vector<16x1xf32>
      %164 = math.rsqrt %163 : vector<16x1xf32>
      %165 = vector.broadcast %164 : vector<16x1xf32> to vector<16x32xf32>
      %166 = arith.mulf %152, %165 : vector<16x32xf32>
      %c0_45 = arith.constant 0 : index
      %c0_46 = arith.constant 0 : index
      %167 = vector.load %arg10[%c0_45, %c0_46] : memref<1x32xf32, #tpu.memory_space<vmem>>, vector<1x32xf32>
      %168 = vector.broadcast %167 : vector<1x32xf32> to vector<16x32xf32>
      %169 = arith.mulf %166, %168 : vector<16x32xf32>
      %c0_47 = arith.constant 0 : index
      %c0_48 = arith.constant 0 : index
      %170 = vector.load %arg11[%c0_47, %c0_48] : memref<16x32xf32, #tpu.memory_space<vmem>>, vector<16x32xf32>
      tpu.vector_store %arg11[%c0_47, %c0_48], %169 {strides = array<i32>} : memref<16x32xf32, #tpu.memory_space<vmem>>, vector<16x32xf32>,
    } else {
    }
    return
  }
  func.func @transform_0(%arg0: i32) -> (i32, i32) {
    %c0_i32 = arith.constant 0 : i32
    %c0_i32_0 = arith.constant 0 : i32
    %c0_i32_1 = arith.constant 0 : i32
    return %c0_i32, %c0_i32_0 : i32, i32
  }
  func.func @transform_1(%arg0: i32) -> (i32, i32) {
    %c0_i32 = arith.constant 0 : i32
    %c0_i32_0 = arith.constant 0 : i32
    %c0_i32_1 = arith.constant 0 : i32
    return %c0_i32, %c0_i32_0 : i32, i32
  }
  func.func @transform_2(%arg0: i32) -> (i32, i32) {
    %c0_i32 = arith.constant 0 : i32
    %c0_i32_0 = arith.constant 0 : i32
    %c0_i32_1 = arith.constant 0 : i32
    return %c0_i32, %c0_i32_0 : i32, i32
  }
  func.func @transform_3(%arg0: i32) -> (i32, i32, i32) {
    %c0_i32 = arith.constant 0 : i32
    %c0_i32_0 = arith.constant 0 : i32
    %c0_i32_1 = arith.constant 0 : i32
    return %arg0, %c0_i32, %c0_i32_0 : i32, i32, i32
  }
  func.func @transform_4(%arg0: i32) -> (i32, i32, i32) {
    %c0_i32 = arith.constant 0 : i32
    %c0_i32_0 = arith.constant 0 : i32
    %c0_i32_1 = arith.constant 0 : i32
    return %arg0, %c0_i32, %c0_i32_0 : i32, i32, i32
  }
  func.func @transform_5(%arg0: i32) -> (i32, i32, i32) {
    %c0_i32 = arith.constant 0 : i32
    %c0_i32_0 = arith.constant 0 : i32
    %c0_i32_1 = arith.constant 0 : i32
    return %arg0, %c0_i32, %c0_i32_0 : i32, i32, i32
  }
  func.func @transform_6(%arg0: i32) -> (i32, i32, i32) {
    %c0_i32 = arith.constant 0 : i32
    %c0_i32_0 = arith.constant 0 : i32
    %c0_i32_1 = arith.constant 0 : i32
    return %arg0, %c0_i32, %c0_i32_0 : i32, i32, i32
  }
  func.func @transform_7(%arg0: i32) -> (i32, i32, i32) {
    %c0_i32 = arith.constant 0 : i32
    %c0_i32_0 = arith.constant 0 : i32
    %c0_i32_1 = arith.constant 0 : i32
    return %arg0, %c0_i32, %c0_i32_0 : i32, i32, i32
  }
  func.func @transform_8(%arg0: i32) -> (i32, i32, i32) {
    %c0_i32 = arith.constant 0 : i32
    %c0_i32_0 = arith.constant 0 : i32
    %c0_i32_1 = arith.constant 0 : i32
    return %arg0, %c0_i32, %c0_i32_0 : i32, i32, i32
  }
  func.func @transform_9(%arg0: i32) -> (i32, i32) {
    %c0_i32 = arith.constant 0 : i32
    %c0_i32_0 = arith.constant 0 : i32
    %c0_i32_1 = arith.constant 0 : i32
    return %c0_i32, %c0_i32_0 : i32, i32
  }
  func.func @transform_10(%arg0: i32) -> (i32, i32) {
    %c0_i32 = arith.constant 0 : i32
    %c0_i32_0 = arith.constant 0 : i32
    %c0_i32_1 = arith.constant 0 : i32
    return %c0_i32, %c0_i32_0 : i32, i32
  }
}

</mosaic_0001>

<llo_original>
// kernel: smollm2_forward.3
$region0: #{smollm2_forward.3}
  #allocation0 [shape = 'u32[]', space=smem, size = 0x4, offset = 0x4, fixed_abs, tag = 'smem constant byte address 0x4 - core index']
  #allocation1 [shape = 'u32[144,128]{1,0:T(1,128)}', space=vmem, size = 0x12000, scoped, tag = 'internal scratch']
  %s0 = inlined_call_operand.vmem [shape: f32[16,32], index: 0, kind: input, shape index: {}]
  %s1 = inlined_call_operand.vmem [shape: f32[32,128], index: 1, kind: input, shape index: {}]
  %s2 = inlined_call_operand.hbm [shape: f32[16,128], index: 2, kind: output, shape index: {}]
  %s3 = sld [smem:[#allocation0]]
  $region18: #{smollm2_forward.3} parent=0
    _
  %s5 = ssub.s32 1, %s3
  %s6 = scalar_select 0, %s5, %s3
  $region1: #{smollm2_forward.3} parent=0
    #allocation2 [shape = 'u8[8192]{0}', space=vmem, size = 0x2000, scoped, tag = 'output window, operand 0, single buffered']
    #allocation3 [shape = 's32[1]{0}', space=sflag, size = 0x4, scoped, tag = 'scoped memory for smollm2_forward.3']
    %7 = vsyncpa [#allocation3], 0
    // Predicated region
    $region2: #{smollm2_forward.3} parent=1 // pred_check
      _
    $region3: #{smollm2_forward.3} parent=1 // pred_check_branch
      %9 = sbr.rel (0) target = $region5
    $region4: #{smollm2_forward.3} parent=1 // pred_region
      _
    $region5: #{smollm2_forward.3} parent=1 // pred_fallthru
      _
    // Predicated region
    $region6: #{smollm2_forward.3} parent=1 // pred_check
      _
    $region7: #{smollm2_forward.3} parent=1 // pred_check_branch
      %11 = sbr.rel (0) target = $region9
    $region8: #{smollm2_forward.3} parent=1 // pred_region
      _
    $region9: #{smollm2_forward.3} parent=1 // pred_fallthru
      _
    %v12 = vld [vmem:[%s0] sm:$0xff]
    %v13 = vld [vmem:[%s0 + $0x8] sm:$0xff]
    %v14 = vld [vmem:[%s1] sm:$0xff]
    %v15 = vld [vmem:[%s1 + $0x8] sm:$0xff]
    %v16 = vld [vmem:[%s1 + $0x10] sm:$0xff]
    %v17 = vld [vmem:[%s1 + $0x18] sm:$0xff]
    %vm18 = vcmask 261120
    %v20 = vsel %vm18, %v12, 0
    %v23 = vsel %vm18, %v13, 0
    %25 = vmatprep.subr.mxu0 0.0
    %26 = vmatpush1.msra.mxu0 0.0
    %27 = vmatprep.subr.mxu0 0.0
    %28 = vmatpush1.msra.mxu0 0.0
    %29 = vmatprep.subr.mxu0 0.0
    %30 = vmatpush1.msra.mxu0 0.0
    %31 = vmatprep.subr.mxu0 0.0
    %32 = vmatpush1.msra.mxu0 0.0
    %33 = vmatprep.subr.mxu0 0.0
    %34 = vmatpush1.msra.mxu0 0.0
    %35 = vmatprep.subr.mxu0 0.0
    %36 = vmatpush1.msra.mxu0 0.0
    %37 = vmatprep.subr.mxu0 0.0
    %38 = vmatpush1.msra.mxu0 0.0
    %39 = vmatprep.subr.mxu0 0.0
    %40 = vmatpush1.msra.mxu0 0.0
    %41 = vmatprep.subr.mxu0 0.0
    %42 = vmatpush1.msra.mxu0 0.0
    %43 = vmatprep.subr.mxu0 0.0
    %44 = vmatpush1.msra.mxu0 0.0
    %45 = vmatprep.subr.mxu0 0.0
    %46 = vmatpush1.msra.mxu0 0.0
    %47 = vmatprep.subr.mxu0 0.0
    %48 = vmatpush1.msra.mxu0 0.0
    %49 = vmatprep.subr.mxu0 0.0
    %50 = vmatpush1.msra.mxu0 %v17
    %51 = vmatprep.subr.mxu0 0.0
    %52 = vmatpush1.msra.mxu0 %v16
    %53 = vmatprep.subr.mxu0 0.0
    %54 = vmatpush1.msra.mxu0 %v15
    %55 = vmatprep.subr.mxu0 0.0
    %56 = vmatpush1.msra.mxu0 %v14
    %57 = vmatprep.subr.mxu0 0.0
    %58 = vmatpush2.msra.mxu0 0.0
    %59 = vmatprep.subr.mxu0 0.0
    %60 = vmatpush2.msra.mxu0 0.0
    %61 = vmatprep.subr.mxu0 0.0
    %62 = vmatpush2.msra.mxu0 0.0
    %63 = vmatprep.subr.mxu0 0.0
    %64 = vmatpush2.msra.mxu0 0.0
    %65 = vmatprep.subr.mxu0 0.0
    %66 = vmatpush2.msra.mxu0 0.0
    %67 = vmatprep.subr.mxu0 0.0
    %68 = vmatpush2.msra.mxu0 0.0
    %69 = vmatprep.subr.mxu0 0.0
    %70 = vmatpush2.msra.mxu0 0.0
    %71 = vmatprep.subr.mxu0 0.0
    %72 = vmatpush2.msra.mxu0 0.0
    %73 = vmatprep.subr.mxu0 0.0
    %74 = vmatpush2.msra.mxu0 0.0
    %75 = vmatprep.subr.mxu0 0.0
    %76 = vmatpush2.msra.mxu0 0.0
    %77 = vmatprep.subr.mxu0 0.0
    %78 = vmatpush2.msra.mxu0 0.0
    %79 = vmatprep.subr.mxu0 0.0
    %80 = vmatpush2.msra.mxu0 0.0
    %81 = vmatprep.subr.mxu0 0.0
    %82 = vmatpush2.msra.mxu0 0.0
    %83 = vmatprep.subr.mxu0 0.0
    %84 = vmatpush2.msra.mxu0 0.0
    %85 = vmatprep.subr.mxu0 0.0
    %86 = vmatpush2.msra.mxu0 0.0
    %87 = vmatprep.subr.mxu0 0.0
    %88 = vmatpush2.msra.mxu0 0.0
    %89 = vmatprep.mubr.f32.mxu0 0.0
    %90 = vmatmul.mubr.f32.gmra.mxu0 %v20
    %v91 = vpop.f32.mrf.mxu0
    %v92 = vadd.f32 0.0, %v91
    %v93 = vpop.f32.mrf.mxu0
    %94 = vmatprep.mubr.f32.mxu0 0.0
    %95 = vmatmul.mubr.f32.gmra.mxu0 %v23
    %v96 = vpop.f32.mrf.mxu0
    %v97 = vadd.f32 0.0, %v96
    %v98 = vpop.f32.mrf.mxu0
    %99 = vdwg.mxu0
    %100 = vst [vmem:[#allocation2] sm:$0xff] %v92
    %101 = vst [vmem:[#allocation2 + $0x8] sm:$0xff] %v97
    // Predicated region
    $region10: #{smollm2_forward.3} parent=1 // pred_check
      _
    $region11: #{smollm2_forward.3} parent=1 // pred_check_branch
      %103 = sbr.rel (0) target = $region13
    $region12: #{smollm2_forward.3} parent=1 // pred_region
      %s105 = ssub.s32 256, 256
      %106 = vsyncadd [#allocation3], %s105
      %s107 = sshll.u32 [#allocation2], 4
      %s108 = int_to_ptr.vmem [resolvable:$true] %s107
      %113 = dma.vmem_to_hbm [thread:$0]  %s108, 256, %s2, [#allocation3], 128, 128, 8
    $region13: #{smollm2_forward.3} parent=1 // pred_fallthru
      _
    // Predicated region
    $region14: #{smollm2_forward.3} parent=1 // pred_check
      _
    $region15: #{smollm2_forward.3} parent=1 // pred_check_branch
      %115 = sbr.rel (0) target = $region17
    $region16: #{smollm2_forward.3} parent=1 // pred_region
      %116 = dma.done [#allocation3], 256
    $region17: #{smollm2_forward.3} parent=1 // pred_fallthru
      _
    %117 = vsyncpa [#allocation3], 1

// kernel: smollm2_forward.2
$region0: #{smollm2_forward.2}
  #allocation0 [shape = 'u32[]', space=smem, size = 0x4, offset = 0x4, fixed_abs, tag = 'smem constant byte address 0x4 - core index']
  #allocation1 [shape = 'u32[144,128]{1,0:T(1,128)}', space=vmem, size = 0x12000, scoped, tag = 'internal scratch']
  #allocation2 [shape = 'f32[16,32]{1,0:T(8,128)}', space=vmem, size = 0x2000, scoped, tag = 'scratch operand']
  %s0 = inlined_call_operand.vmem [shape: f32[16,32], index: 0, kind: input, shape index: {}]
  %s1 = inlined_call_operand.vmem [shape: f32[8,8], index: 1, kind: input, shape index: {}]
  %s2 = inlined_call_operand.vmem [shape: f32[8,8], index: 2, kind: input, shape index: {}]
  %s3 = inlined_call_operand.vmem [shape: f32[2,1,32], index: 3, kind: input, shape index: {}]
  %s4 = inlined_call_operand.vmem [shape: f32[2,1,32], index: 4, kind: input, shape index: {}]
  %s5 = inlined_call_operand.vmem [shape: f32[2,32,64], index: 5, kind: input, shape index: {}]
  %s6 = inlined_call_operand.vmem [shape: f32[2,32,32], index: 6, kind: input, shape index: {}]
  %s7 = inlined_call_operand.vmem [shape: f32[2,32,128], index: 7, kind: input, shape index: {}]
  %s8 = inlined_call_operand.vmem [shape: f32[2,64,32], index: 8, kind: input, shape index: {}]
  %s9 = inlined_call_operand.vmem [shape: f32[1,32], index: 9, kind: input, shape index: {}]
  %s10 = inlined_call_operand.vmem [shape: f32[16,32], index: 10, kind: output, shape index: {}]
  %s11 = sld [smem:[#allocation0]]
  $region81: #{smollm2_forward.2} parent=0
    _
  %s13 = ssub.s32 1, %s11
  %s14 = scalar_select 0, %s13, %s11
  loop: start=0, step=1, limit=4
  $region2: #{smollm2_forward.2} parent=0 // loop_pre_header
    _
  $region3: #{smollm2_forward.2} parent=0 // loop_header
    %s16 = sphi 0, %s20
    %p17 = scmp.ge.s32.totalorder %s16, 4
    %s24 = sphi 0, %s24
    %s26 = sphi 0, %s24
    %s27 = sphi 0, %s26
    %s41 = sphi 0, %s27
    %s45 = sphi 0, %s45
    %s47 = sphi 0, %s45
    %s48 = sphi 0, %s47
    %s62 = sphi 0, %s48
    %s66 = sphi 0, %s66
    %s68 = sphi 0, %s66
    %s69 = sphi 0, %s68
    %s83 = sphi 0, %s69
    %s89 = sphi 0, %s91
    %s92 = sphi 0, %s89
    %s93 = sphi 0, %s92
    %s109 = sphi 0, %s93
    %s115 = sphi 0, %s117
    %s118 = sphi 0, %s115
    %s119 = sphi 0, %s118
    %s135 = sphi 0, %s119
    %s141 = sphi 0, %s143
    %s144 = sphi 0, %s141
    %s145 = sphi 0, %s144
    %s161 = sphi 0, %s145
    %s167 = sphi 0, %s169
    %s170 = sphi 0, %s167
    %s171 = sphi 0, %s170
    %s187 = sphi 0, %s171
    %s193 = sphi 0, %s195
    %s196 = sphi 0, %s193
    %s197 = sphi 0, %s196
    %s213 = sphi 0, %s197
    %s219 = sphi 0, %s221
    %s222 = sphi 0, %s219
    %s223 = sphi 0, %s222
    %s239 = sphi 0, %s223
    %s243 = sphi 0, %s243
    %s245 = sphi 0, %s243
    %s246 = sphi 0, %s245
    %s260 = sphi 0, %s246
    %s264 = sphi 0, %s264
    %s266 = sphi 0, %s264
    %s267 = sphi 0, %s266
    %s281 = sphi 0, %s267
  $region4: #{smollm2_forward.2} parent=0 // loop_header_branch
    %19 = sbr.rel (%p17) target = $region8
  $region5: #{smollm2_forward.2} parent=0 // loop_body
    %s21 = ssub.s32 %s16, 1
    %s22 = ssub.s32 %s16, 2
    %s23 = sadd.s32 %s16, 1
    %s25 = sadd.s32 %s24, 1
    %p28 = scmp.eq.s32.totalorder %s16, 1
    %p29 = scmp.ne.s32.totalorder %s24, %s26
    %p30 = scmp.eq.s32.totalorder %s16, 0
    %p31 = por %p29, %p30
    %p32 = scmp.ne.s32.totalorder %s24, %s26
    %p33 = scmp.eq.s32.totalorder %s21, 1
    %p34 = por %p32, %p33
    %p35 = scmp.ne.s32.totalorder %s26, %s27
    %p36 = scmp.eq.s32.totalorder %s21, 0
    %p37 = por %p35, %p36
    %p38 = scmp.ne.s32.totalorder %s26, %s27
    %p39 = scmp.eq.s32.totalorder %s22, 1
    %p40 = por %p38, %p39
    %p42 = scmp.ne.s32.totalorder %s27, %s41
    %p43 = scmp.eq.s32.totalorder %s22, 0
    %p44 = por %p42, %p43
    %s46 = sadd.s32 %s45, 1
    %p49 = scmp.eq.s32.totalorder %s16, 1
    %p50 = scmp.ne.s32.totalorder %s45, %s47
    %p51 = scmp.eq.s32.totalorder %s16, 0
    %p52 = por %p50, %p51
    %p53 = scmp.ne.s32.totalorder %s45, %s47
    %p54 = scmp.eq.s32.totalorder %s21, 1
    %p55 = por %p53, %p54
    %p56 = scmp.ne.s32.totalorder %s47, %s48
    %p57 = scmp.eq.s32.totalorder %s21, 0
    %p58 = por %p56, %p57
    %p59 = scmp.ne.s32.totalorder %s47, %s48
    %p60 = scmp.eq.s32.totalorder %s22, 1
    %p61 = por %p59, %p60
    %p63 = scmp.ne.s32.totalorder %s48, %s62
    %p64 = scmp.eq.s32.totalorder %s22, 0
    %p65 = por %p63, %p64
    %s67 = sadd.s32 %s66, 1
    %p70 = scmp.eq.s32.totalorder %s16, 1
    %p71 = scmp.ne.s32.totalorder %s66, %s68
    %p72 = scmp.eq.s32.totalorder %s16, 0
    %p73 = por %p71, %p72
    %p74 = scmp.ne.s32.totalorder %s66, %s68
    %p75 = scmp.eq.s32.totalorder %s21, 1
    %p76 = por %p74, %p75
    %p77 = scmp.ne.s32.totalorder %s68, %s69
    %p78 = scmp.eq.s32.totalorder %s21, 0
    %p79 = por %p77, %p78
    %p80 = scmp.ne.s32.totalorder %s68, %s69
    %p81 = scmp.eq.s32.totalorder %s22, 1
    %p82 = por %p80, %p81
    %p84 = scmp.ne.s32.totalorder %s69, %s83
    %p85 = scmp.eq.s32.totalorder %s22, 0
    %p86 = por %p84, %p85
    %s87 = ssub.s32 %s16, %s23
    %p88 = scmp.eq.s32.totalorder %s87, 0
    %s90 = sadd.s32 %s89, 1
    %s91 = scalar_select %p88, %s89, %s90
    %p94 = pneg %p88
    %p95 = scmp.eq.s32.totalorder %s16, 1
    %p96 = por %p94, %p95
    %p97 = scmp.ne.s32.totalorder %s89, %s92
    %p98 = scmp.eq.s32.totalorder %s16, 0
    %p99 = por %p97, %p98
    %p100 = scmp.ne.s32.totalorder %s89, %s92
    %p101 = scmp.eq.s32.totalorder %s21, 1
    %p102 = por %p100, %p101
    %p103 = scmp.ne.s32.totalorder %s92, %s93
    %p104 = scmp.eq.s32.totalorder %s21, 0
    %p105 = por %p103, %p104
    %p106 = scmp.ne.s32.totalorder %s92, %s93
    %p107 = scmp.eq.s32.totalorder %s22, 1
    %p108 = por %p106, %p107
    %p110 = scmp.ne.s32.totalorder %s93, %s109
    %p111 = scmp.eq.s32.totalorder %s22, 0
    %p112 = por %p110, %p111
    %s113 = ssub.s32 %s16, %s23
    %p114 = scmp.eq.s32.totalorder %s113, 0
    %s116 = sadd.s32 %s115, 1
    %s117 = scalar_select %p114, %s115, %s116
    %p120 = pneg %p114
    %p121 = scmp.eq.s32.totalorder %s16, 1
    %p122 = por %p120, %p121
    %p123 = scmp.ne.s32.totalorder %s115, %s118
    %p124 = scmp.eq.s32.totalorder %s16, 0
    %p125 = por %p123, %p124
    %p126 = scmp.ne.s32.totalorder %s115, %s118
    %p127 = scmp.eq.s32.totalorder %s21, 1
    %p128 = por %p126, %p127
    %p129 = scmp.ne.s32.totalorder %s118, %s119
    %p130 = scmp.eq.s32.totalorder %s21, 0
    %p131 = por %p129, %p130
    %p132 = scmp.ne.s32.totalorder %s118, %s119
    %p133 = scmp.eq.s32.totalorder %s22, 1
    %p134 = por %p132, %p133
    %p136 = scmp.ne.s32.totalorder %s119, %s135
    %p137 = scmp.eq.s32.totalorder %s22, 0
    %p138 = por %p136, %p137
    %s139 = ssub.s32 %s16, %s23
    %p140 = scmp.eq.s32.totalorder %s139, 0
    %s142 = sadd.s32 %s141, 1
    %s143 = scalar_select %p140, %s141, %s142
    %p146 = pneg %p140
    %p147 = scmp.eq.s32.totalorder %s16, 1
    %p148 = por %p146, %p147
    %p149 = scmp.ne.s32.totalorder %s141, %s144
    %p150 = scmp.eq.s32.totalorder %s16, 0
    %p151 = por %p149, %p150
    %p152 = scmp.ne.s32.totalorder %s141, %s144
    %p153 = scmp.eq.s32.totalorder %s21, 1
    %p154 = por %p152, %p153
    %p155 = scmp.ne.s32.totalorder %s144, %s145
    %p156 = scmp.eq.s32.totalorder %s21, 0
    %p157 = por %p155, %p156
    %p158 = scmp.ne.s32.totalorder %s144, %s145
    %p159 = scmp.eq.s32.totalorder %s22, 1
    %p160 = por %p158, %p159
    %p162 = scmp.ne.s32.totalorder %s145, %s161
    %p163 = scmp.eq.s32.totalorder %s22, 0
    %p164 = por %p162, %p163
    %s165 = ssub.s32 %s16, %s23
    %p166 = scmp.eq.s32.totalorder %s165, 0
    %s168 = sadd.s32 %s167, 1
    %s169 = scalar_select %p166, %s167, %s168
    %p172 = pneg %p166
    %p173 = scmp.eq.s32.totalorder %s16, 1
    %p174 = por %p172, %p173
    %p175 = scmp.ne.s32.totalorder %s167, %s170
    %p176 = scmp.eq.s32.totalorder %s16, 0
    %p177 = por %p175, %p176
    %p178 = scmp.ne.s32.totalorder %s167, %s170
    %p179 = scmp.eq.s32.totalorder %s21, 1
    %p180 = por %p178, %p179
    %p181 = scmp.ne.s32.totalorder %s170, %s171
    %p182 = scmp.eq.s32.totalorder %s21, 0
    %p183 = por %p181, %p182
    %p184 = scmp.ne.s32.totalorder %s170, %s171
    %p185 = scmp.eq.s32.totalorder %s22, 1
    %p186 = por %p184, %p185
    %p188 = scmp.ne.s32.totalorder %s171, %s187
    %p189 = scmp.eq.s32.totalorder %s22, 0
    %p190 = por %p188, %p189
    %s191 = ssub.s32 %s16, %s23
    %p192 = scmp.eq.s32.totalorder %s191, 0
    %s194 = sadd.s32 %s193, 1
    %s195 = scalar_select %p192, %s193, %s194
    %p198 = pneg %p192
    %p199 = scmp.eq.s32.totalorder %s16, 1
    %p200 = por %p198, %p199
    %p201 = scmp.ne.s32.totalorder %s193, %s196
    %p202 = scmp.eq.s32.totalorder %s16, 0
    %p203 = por %p201, %p202
    %p204 = scmp.ne.s32.totalorder %s193, %s196
    %p205 = scmp.eq.s32.totalorder %s21, 1
    %p206 = por %p204, %p205
    %p207 = scmp.ne.s32.totalorder %s196, %s197
    %p208 = scmp.eq.s32.totalorder %s21, 0
    %p209 = por %p207, %p208
    %p210 = scmp.ne.s32.totalorder %s196, %s197
    %p211 = scmp.eq.s32.totalorder %s22, 1
    %p212 = por %p210, %p211
    %p214 = scmp.ne.s32.totalorder %s197, %s213
    %p215 = scmp.eq.s32.totalorder %s22, 0
    %p216 = por %p214, %p215
    %s217 = ssub.s32 %s16, %s23
    %p218 = scmp.eq.s32.totalorder %s217, 0
    %s220 = sadd.s32 %s219, 1
    %s221 = scalar_select %p218, %s219, %s220
    %p224 = pneg %p218
    %p225 = scmp.eq.s32.totalorder %s16, 1
    %p226 = por %p224, %p225
    %p227 = scmp.ne.s32.totalorder %s219, %s222
    %p228 = scmp.eq.s32.totalorder %s16, 0
    %p229 = por %p227, %p228
    %p230 = scmp.ne.s32.totalorder %s219, %s222
    %p231 = scmp.eq.s32.totalorder %s21, 1
    %p232 = por %p230, %p231
    %p233 = scmp.ne.s32.totalorder %s222, %s223
    %p234 = scmp.eq.s32.totalorder %s21, 0
    %p235 = por %p233, %p234
    %p236 = scmp.ne.s32.totalorder %s222, %s223
    %p237 = scmp.eq.s32.totalorder %s22, 1
    %p238 = por %p236, %p237
    %p240 = scmp.ne.s32.totalorder %s223, %s239
    %p241 = scmp.eq.s32.totalorder %s22, 0
    %p242 = por %p240, %p241
    %s244 = sadd.s32 %s243, 1
    %p247 = scmp.eq.s32.totalorder %s16, 1
    %p248 = scmp.ne.s32.totalorder %s243, %s245
    %p249 = scmp.eq.s32.totalorder %s16, 0
    %p250 = por %p248, %p249
    %p251 = scmp.ne.s32.totalorder %s243, %s245
    %p252 = scmp.eq.s32.totalorder %s21, 1
    %p253 = por %p251, %p252
    %p254 = scmp.ne.s32.totalorder %s245, %s246
    %p255 = scmp.eq.s32.totalorder %s21, 0
    %p256 = por %p254, %p255
    %p257 = scmp.ne.s32.totalorder %s245, %s246
    %p258 = scmp.eq.s32.totalorder %s22, 1
    %p259 = por %p257, %p258
    %p261 = scmp.ne.s32.totalorder %s246, %s260
    %p262 = scmp.eq.s32.totalorder %s22, 0
    %p263 = por %p261, %p262
    %s265 = sadd.s32 %s264, 1
    %p268 = scmp.eq.s32.totalorder %s16, 1
    %p269 = scmp.ne.s32.totalorder %s264, %s266
    %p270 = scmp.eq.s32.totalorder %s16, 0
    %p271 = por %p269, %p270
    %p272 = scmp.ne.s32.totalorder %s264, %s266
    %p273 = scmp.eq.s32.totalorder %s21, 1
    %p274 = por %p272, %p273
    %p275 = scmp.ne.s32.totalorder %s266, %s267
    %p276 = scmp.eq.s32.totalorder %s21, 0
    %p277 = por %p275, %p276
    %p278 = scmp.ne.s32.totalorder %s266, %s267
    %p279 = scmp.eq.s32.totalorder %s22, 1
    %p280 = por %p278, %p279
    %p282 = scmp.ne.s32.totalorder %s267, %s281
    %p283 = scmp.eq.s32.totalorder %s22, 0
    %p284 = por %p282, %p283
    %p285 = scmp.le.s32.totalorder 1, %s16
    %p286 = scmp.lt.s32.totalorder %s16, 3
    %p287 = pnand %p285, %p286
    %p288 = pneg %p287
    // Predicated region
    $region9: #{smollm2_forward.2} parent=5 // pred_check
      _
    $region10: #{smollm2_forward.2} parent=5 // pred_check_branch
      %290 = sbr.rel (%p287) target = $region12
    $region11: #{smollm2_forward.2} parent=5 // pred_region
      %s291 = ssub.s32 %s16, 1
      // Predicated region
      $region13: #{smollm2_forward.2} parent=11 // pred_check
        %p292 = pneg %p37
      $region14: #{smollm2_forward.2} parent=11 // pred_check_branch
        %294 = sbr.rel (%p292) target = $region16
      $region15: #{smollm2_forward.2} parent=11 // pred_region
        _
      $region16: #{smollm2_forward.2} parent=11 // pred_fallthru
        _
      // Predicated region
      $region17: #{smollm2_forward.2} parent=11 // pred_check
        %p295 = pneg %p58
      $region18: #{smollm2_forward.2} parent=11 // pred_check_branch
        %297 = sbr.rel (%p295) target = $region20
      $region19: #{smollm2_forward.2} parent=11 // pred_region
        _
      $region20: #{smollm2_forward.2} parent=11 // pred_fallthru
        _
      // Predicated region
      $region21: #{smollm2_forward.2} parent=11 // pred_check
        %p298 = pneg %p79
      $region22: #{smollm2_forward.2} parent=11 // pred_check_branch
        %300 = sbr.rel (%p298) target = $region24
      $region23: #{smollm2_forward.2} parent=11 // pred_region
        _
      $region24: #{smollm2_forward.2} parent=11 // pred_fallthru
        _
      // Predicated region
      $region25: #{smollm2_forward.2} parent=11 // pred_check
        %p301 = pneg %p256
      $region26: #{smollm2_forward.2} parent=11 // pred_check_branch
        %303 = sbr.rel (%p301) target = $region28
      $region27: #{smollm2_forward.2} parent=11 // pred_region
        _
      $region28: #{smollm2_forward.2} parent=11 // pred_fallthru
        _
    $region12: #{smollm2_forward.2} parent=5 // pred_fallthru
      _
    %p304 = scmp.lt.s32.totalorder %s16, 2
    // Predicated region
    $region29: #{smollm2_forward.2} parent=5 // pred_check
      %p305 = pneg %p304
    $region30: #{smollm2_forward.2} parent=5 // pred_check_branch
      %307 = sbr.rel (%p305) target = $region32
    $region31: #{smollm2_forward.2} parent=5 // pred_region
      // Predicated region
      $region33: #{smollm2_forward.2} parent=31 // pred_check
        %p308 = pneg %p99
      $region34: #{smollm2_forward.2} parent=31 // pred_check_branch
        %310 = sbr.rel (%p308) target = $region36
      $region35: #{smollm2_forward.2} parent=31 // pred_region
        %p311 = scmp.lt.s32.totalorder %s16, 1
        %s312 = scalar_select %p311, %s16, 1
        %s313 = scalar_lea.vmem %s3, %s312
      $region36: #{smollm2_forward.2} parent=31 // pred_fallthru
        _
      // Predicated region
      $region37: #{smollm2_forward.2} parent=31 // pred_check
        %p314 = pneg %p125
      $region38: #{smollm2_forward.2} parent=31 // pred_check_branch
        %316 = sbr.rel (%p314) target = $region40
      $region39: #{smollm2_forward.2} parent=31 // pred_region
        %p317 = scmp.lt.s32.totalorder %s16, 1
        %s318 = scalar_select %p317, %s16, 1
        %s319 = scalar_lea.vmem %s4, %s318
      $region40: #{smollm2_forward.2} parent=31 // pred_fallthru
        _
      // Predicated region
      $region41: #{smollm2_forward.2} parent=31 // pred_check
        %p320 = pneg %p151
      $region42: #{smollm2_forward.2} parent=31 // pred_check_branch
        %322 = sbr.rel (%p320) target = $region44
      $region43: #{smollm2_forward.2} parent=31 // pred_region
        %p323 = scmp.lt.s32.totalorder %s16, 1
        %s324 = scalar_select %p323, %s16, 1
        %s325 = smul.addr %s324, 4
        %s326 = smul.addr %s325, 8
        %s327 = scalar_lea.vmem %s5, %s326
      $region44: #{smollm2_forward.2} parent=31 // pred_fallthru
        _
      // Predicated region
      $region45: #{smollm2_forward.2} parent=31 // pred_check
        %p328 = pneg %p177
      $region46: #{smollm2_forward.2} parent=31 // pred_check_branch
        %330 = sbr.rel (%p328) target = $region48
      $region47: #{smollm2_forward.2} parent=31 // pred_region
        %p331 = scmp.lt.s32.totalorder %s16, 1
        %s332 = scalar_select %p331, %s16, 1
        %s333 = smul.addr %s332, 4
        %s334 = smul.addr %s333, 8
        %s335 = scalar_lea.vmem %s6, %s334
      $region48: #{smollm2_forward.2} parent=31 // pred_fallthru
        _
      // Predicated region
      $region49: #{smollm2_forward.2} parent=31 // pred_check
        %p336 = pneg %p203
      $region50: #{smollm2_forward.2} parent=31 // pred_check_branch
        %338 = sbr.rel (%p336) target = $region52
      $region51: #{smollm2_forward.2} parent=31 // pred_region
        %p339 = scmp.lt.s32.totalorder %s16, 1
        %s340 = scalar_select %p339, %s16, 1
        %s341 = smul.addr %s340, 4
        %s342 = smul.addr %s341, 8
        %s343 = scalar_lea.vmem %s7, %s342
      $region52: #{smollm2_forward.2} parent=31 // pred_fallthru
        _
      // Predicated region
      $region53: #{smollm2_forward.2} parent=31 // pred_check
        %p344 = pneg %p229
      $region54: #{smollm2_forward.2} parent=31 // pred_check_branch
        %346 = sbr.rel (%p344) target = $region56
      $region55: #{smollm2_forward.2} parent=31 // pred_region
        %p347 = scmp.lt.s32.totalorder %s16, 1
        %s348 = scalar_select %p347, %s16, 1
        %s349 = smul.addr %s348, 8
        %s350 = smul.addr %s349, 8
        %s351 = scalar_lea.vmem %s8, %s350
      $region56: #{smollm2_forward.2} parent=31 // pred_fallthru
        _
    $region32: #{smollm2_forward.2} parent=5 // pred_fallthru
      _
    %p352 = scmp.le.s32.totalorder 1, %s16
    %p353 = scmp.lt.s32.totalorder %s16, 3
    %p354 = pnand %p352, %p353
    %p355 = pneg %p354
    // Predicated region
    $region57: #{smollm2_forward.2} parent=5 // pred_check
      _
    $region58: #{smollm2_forward.2} parent=5 // pred_check_branch
      %357 = sbr.rel (%p354) target = $region60
    $region59: #{smollm2_forward.2} parent=5 // pred_region
      %s358 = ssub.s32 %s16, 1
      %p359 = pneg %p37
      %p360 = pneg %p34
      %p361 = pneg %p58
      %p362 = pneg %p55
      %p363 = pneg %p79
      %p364 = pneg %p76
      %p365 = scmp.lt.s32.totalorder %s21, 1
      %s366 = scalar_select %p365, %s21, 1
      %s367 = scalar_lea.vmem %s3, %s366
      %p368 = pneg %p105
      %p369 = pneg %p102
      %p370 = scmp.lt.s32.totalorder %s21, 1
      %s371 = scalar_select %p370, %s21, 1
      %s372 = scalar_lea.vmem %s4, %s371
      %p373 = pneg %p131
      %p374 = pneg %p128
      %p375 = scmp.lt.s32.totalorder %s21, 1
      %s376 = scalar_select %p375, %s21, 1
      %s377 = smul.addr %s376, 4
      %s378 = smul.addr %s377, 8
      %s379 = scalar_lea.vmem %s5, %s378
      %p380 = pneg %p157
      %p381 = pneg %p154
      %p382 = scmp.lt.s32.totalorder %s21, 1
      %s383 = scalar_select %p382, %s21, 1
      %s384 = smul.addr %s383, 4
      %s385 = smul.addr %s384, 8
      %s386 = scalar_lea.vmem %s6, %s385
      %p387 = pneg %p183
      %p388 = pneg %p180
      %p389 = scmp.lt.s32.totalorder %s21, 1
      %s390 = scalar_select %p389, %s21, 1
      %s391 = smul.addr %s390, 4
      %s392 = smul.addr %s391, 8
      %s393 = scalar_lea.vmem %s7, %s392
      %p394 = pneg %p209
      %p395 = pneg %p206
      %p396 = scmp.lt.s32.totalorder %s21, 1
      %s397 = scalar_select %p396, %s21, 1
      %s398 = smul.addr %s397, 8
      %s399 = smul.addr %s398, 8
      %s400 = scalar_lea.vmem %s8, %s399
      %p401 = pneg %p235
      %p402 = pneg %p232
      %p403 = pneg %p256
      %p404 = pneg %p253
      %p405 = pneg %p277
      %p406 = pneg %p274
      %p407 = scmp.lt.s32.totalorder %s21, 1
      %s408 = scalar_select %p407, %s21, 1
      %s409 = scalar_lea.vmem %s3, %s408
      %p410 = scmp.lt.s32.totalorder %s21, 1
      %s411 = scalar_select %p410, %s21, 1
      %s412 = scalar_lea.vmem %s4, %s411
      %p413 = scmp.lt.s32.totalorder %s21, 1
      %s414 = scalar_select %p413, %s21, 1
      %s415 = smul.addr %s414, 4
      %s416 = smul.addr %s415, 8
      %s417 = scalar_lea.vmem %s5, %s416
      %p418 = scmp.lt.s32.totalorder %s21, 1
      %s419 = scalar_select %p418, %s21, 1
      %s420 = smul.addr %s419, 4
      %s421 = smul.addr %s420, 8
      %s422 = scalar_lea.vmem %s6, %s421
      %p423 = scmp.lt.s32.totalorder %s21, 1
      %s424 = scalar_select %p423, %s21, 1
      %s425 = smul.addr %s424, 4
      %s426 = smul.addr %s425, 8
      %s427 = scalar_lea.vmem %s7, %s426
      %p428 = scmp.lt.s32.totalorder %s21, 1
      %s429 = scalar_select %p428, %s21, 1
      %s430 = smul.addr %s429, 8
      %s431 = smul.addr %s430, 8
      %s432 = scalar_lea.vmem %s8, %s431
      %p433 = scmp.eq.s32.totalorder %s21, 0
      // Predicated region
      $region61: #{smollm2_forward.2} parent=59 // pred_check
        %p434 = pneg %p433
      $region62: #{smollm2_forward.2} parent=59 // pred_check_branch
        %436 = sbr.rel (%p434) target = $region64
      $region63: #{smollm2_forward.2} parent=59 // pred_region
        %v437 = vld [vmem:[%s0] sm:$0xff]
        %v438 = vld [vmem:[%s0 + $0x8] sm:$0xff]
        %vm439 = vcmask 261120
        %440 = vst.msk [vmem:[#allocation2] sm:$0xff] %vm439, %v437
        %441 = vst.msk [vmem:[#allocation2 + $0x8] sm:$0xff] %vm439, %v438
      $region64: #{smollm2_forward.2} parent=59 // pred_fallthru
        _
      %v442 = vld [vmem:[#allocation2] sm:$0xff]
      %v443 = vld [vmem:[#allocation2 + $0x8] sm:$0xff]
      %v444 = vmul.f32 %v442, %v442
      %v445 = vmul.f32 %v443, %v443
      %vm446 = vcmask 261120
      %v447 = vsel %vm446, %v444, 0.0
      %448 = vadd.xlane.f32.xlu0 %v447
      %v449 = vpop.xlane.xlu0 %448
      %v450 = vsel %vm446, %v445, 0.0
      %451 = vadd.xlane.f32.xlu0 %v450
      %v452 = vpop.xlane.xlu0 %451
      %v453 = vrcp.pop 32.0
      %v454 = vmul.f32 %v449, %v453
      %v455 = vmul.f32 %v452, %v453
      %v456 = vadd.f32 %v454, 1e-05
      %v457 = vadd.f32 %v455, 1e-05
      %v458 = vrsqrt.pop %v456
      %v459 = vrsqrt.pop %v457
      %v460 = vmul.f32 %v442, %v458
      %v461 = vmul.f32 %v443, %v459
      %v462 = vld [vmem:[%s409] sm:$0x1]
      %v464 = vlaneseq
      %v465 = vshrl.u32 %v464, 7
      %v466 = vsub.s32 0, %v465
      %v467 = vrot.slane %v462, %v466
      %v469 = vmul.f32 %v460, %v467
      %v470 = vmul.f32 %v461, %v467
      %v471 = vld [vmem:[%s417] sm:$0xff]
      %v472 = vld [vmem:[%s417 + $0x8] sm:$0xff]
      %v473 = vld [vmem:[%s417 + $0x10] sm:$0xff]
      %v474 = vld [vmem:[%s417 + $0x18] sm:$0xff]
      %v476 = vsel %vm446, %v469, 0
      %v479 = vsel %vm446, %v470, 0
      %481 = vmatprep.subr.mxu0 0.0
      %482 = vmatpush1.msra.mxu0 0.0
      %483 = vmatprep.subr.mxu0 0.0
      %484 = vmatpush1.msra.mxu0 0.0
      %485 = vmatprep.subr.mxu0 0.0
      %486 = vmatpush1.msra.mxu0 0.0
      %487 = vmatprep.subr.mxu0 0.0
      %488 = vmatpush1.msra.mxu0 0.0
      %489 = vmatprep.subr.mxu0 0.0
      %490 = vmatpush1.msra.mxu0 0.0
      %491 = vmatprep.subr.mxu0 0.0
      %492 = vmatpush1.msra.mxu0 0.0
      %493 = vmatprep.subr.mxu0 0.0
      %494 = vmatpush1.msra.mxu0 0.0
      %495 = vmatprep.subr.mxu0 0.0
      %496 = vmatpush1.msra.mxu0 0.0
      %497 = vmatprep.subr.mxu0 0.0
      %498 = vmatpush1.msra.mxu0 0.0
      %499 = vmatprep.subr.mxu0 0.0
      %500 = vmatpush1.msra.mxu0 0.0
      %501 = vmatprep.subr.mxu0 0.0
      %502 = vmatpush1.msra.mxu0 0.0
      %503 = vmatprep.subr.mxu0 0.0
      %504 = vmatpush1.msra.mxu0 0.0
      %505 = vmatprep.subr.mxu0 0.0
      %506 = vmatpush1.msra.mxu0 %v474
      %507 = vmatprep.subr.mxu0 0.0
      %508 = vmatpush1.msra.mxu0 %v473
      %509 = vmatprep.subr.mxu0 0.0
      %510 = vmatpush1.msra.mxu0 %v472
      %511 = vmatprep.subr.mxu0 0.0
      %512 = vmatpush1.msra.mxu0 %v471
      %513 = vmatprep.subr.mxu0 0.0
      %514 = vmatpush2.msra.mxu0 0.0
      %515 = vmatprep.subr.mxu0 0.0
      %516 = vmatpush2.msra.mxu0 0.0
      %517 = vmatprep.subr.mxu0 0.0
      %518 = vmatpush2.msra.mxu0 0.0
      %519 = vmatprep.subr.mxu0 0.0
      %520 = vmatpush2.msra.mxu0 0.0
      %521 = vmatprep.subr.mxu0 0.0
      %522 = vmatpush2.msra.mxu0 0.0
      %523 = vmatprep.subr.mxu0 0.0
      %524 = vmatpush2.msra.mxu0 0.0
      %525 = vmatprep.subr.mxu0 0.0
      %526 = vmatpush2.msra.mxu0 0.0
      %527 = vmatprep.subr.mxu0 0.0
      %528 = vmatpush2.msra.mxu0 0.0
      %529 = vmatprep.subr.mxu0 0.0
      %530 = vmatpush2.msra.mxu0 0.0
      %531 = vmatprep.subr.mxu0 0.0
      %532 = vmatpush2.msra.mxu0 0.0
      %533 = vmatprep.subr.mxu0 0.0
      %534 = vmatpush2.msra.mxu0 0.0
      %535 = vmatprep.subr.mxu0 0.0
      %536 = vmatpush2.msra.mxu0 0.0
      %537 = vmatprep.subr.mxu0 0.0
      %538 = vmatpush2.msra.mxu0 0.0
      %539 = vmatprep.subr.mxu0 0.0
      %540 = vmatpush2.msra.mxu0 0.0
      %541 = vmatprep.subr.mxu0 0.0
      %542 = vmatpush2.msra.mxu0 0.0
      %543 = vmatprep.subr.mxu0 0.0
      %544 = vmatpush2.msra.mxu0 0.0
      %545 = vmatprep.mubr.f32.mxu0 0.0
      %546 = vmatmul.mubr.f32.gmra.mxu0 %v476
      %v547 = vpop.f32.mrf.mxu0
      %v548 = vadd.f32 0.0, %v547
      %v549 = vpop.f32.mrf.mxu0
      %550 = vmatprep.mubr.f32.mxu0 0.0
      %551 = vmatmul.mubr.f32.gmra.mxu0 %v479
      %v552 = vpop.f32.mrf.mxu0
      %v553 = vadd.f32 0.0, %v552
      %v554 = vpop.f32.mrf.mxu0
      %555 = vdwg.mxu0
      %557 = vrot.lane.b32.xlu0 %v548, 120
      %v558 = vpop.permute.xlu0 %557
      %561 = vrot.lane.b32.xlu0 %v553, 120
      %v562 = vpop.permute.xlu0 %561
      %564 = vrot.lane.b32.xlu0 %v548, 112
      %v565 = vpop.permute.xlu0 %564
      %566 = vrot.lane.b32.xlu0 %v558, 112
      %v567 = vpop.permute.xlu0 %566
      %570 = vrot.lane.b32.xlu0 %v553, 112
      %v571 = vpop.permute.xlu0 %570
      %572 = vrot.lane.b32.xlu0 %v562, 112
      %v573 = vpop.permute.xlu0 %572
      %v576 = vld [vmem:[%s1] sm:$0xff]
      %v577 = vld [vmem:[%s2] sm:$0xff]
      %v578 = vmul.f32 %v548, %v576
      %v579 = vmul.f32 %v558, %v576
      %v580 = vmul.f32 %v565, %v576
      %v581 = vmul.f32 %v567, %v576
      %v582 = vmul.f32 %v553, %v576
      %v583 = vmul.f32 %v562, %v576
      %v584 = vmul.f32 %v571, %v576
      %v585 = vmul.f32 %v573, %v576
      %586 = vrot.lane.b32.xlu0 %v548, 124
      %v587 = vpop.permute.xlu0 %586
      %588 = vrot.lane.b32.xlu0 %v558, 124
      %v589 = vpop.permute.xlu0 %588
      %590 = vrot.lane.b32.xlu0 %v565, 124
      %v591 = vpop.permute.xlu0 %590
      %592 = vrot.lane.b32.xlu0 %v567, 124
      %v593 = vpop.permute.xlu0 %592
      %594 = vrot.lane.b32.xlu0 %v553, 124
      %v595 = vpop.permute.xlu0 %594
      %596 = vrot.lane.b32.xlu0 %v562, 124
      %v597 = vpop.permute.xlu0 %596
      %598 = vrot.lane.b32.xlu0 %v571, 124
      %v599 = vpop.permute.xlu0 %598
      %600 = vrot.lane.b32.xlu0 %v573, 124
      %v601 = vpop.permute.xlu0 %600
      %610 = vrot.lane.b32.xlu0 %v548, 4
      %v611 = vpop.permute.xlu0 %610
      %612 = vrot.lane.b32.xlu0 %v558, 4
      %v613 = vpop.permute.xlu0 %612
      %614 = vrot.lane.b32.xlu0 %v565, 4
      %v615 = vpop.permute.xlu0 %614
      %616 = vrot.lane.b32.xlu0 %v567, 4
      %v617 = vpop.permute.xlu0 %616
      %618 = vrot.lane.b32.xlu0 %v553, 4
      %v619 = vpop.permute.xlu0 %618
      %620 = vrot.lane.b32.xlu0 %v562, 4
      %v621 = vpop.permute.xlu0 %620
      %622 = vrot.lane.b32.xlu0 %v571, 4
      %v623 = vpop.permute.xlu0 %622
      %624 = vrot.lane.b32.xlu0 %v573, 4
      %v625 = vpop.permute.xlu0 %624
      %vm634 = vcmask 31744
      %v635 = vsel %vm634, %v587, %v611
      %v636 = vsel %vm634, %v589, %v613
      %v637 = vsel %vm634, %v591, %v615
      %v638 = vsel %vm634, %v593, %v617
      %v639 = vsel %vm634, %v595, %v619
      %v640 = vsel %vm634, %v597, %v621
      %v641 = vsel %vm634, %v599, %v623
      %v642 = vsel %vm634, %v601, %v625
      %v643 = vmul.f32 %v635, %v577
      %v644 = vmul.f32 %v636, %v577
      %v645 = vmul.f32 %v637, %v577
      %v646 = vmul.f32 %v638, %v577
      %v647 = vmul.f32 %v639, %v577
      %v648 = vmul.f32 %v640, %v577
      %v649 = vmul.f32 %v641, %v577
      %v650 = vmul.f32 %v642, %v577
      %v651 = vadd.f32 %v578, %v643
      %v652 = vadd.f32 %v579, %v644
      %v653 = vadd.f32 %v580, %v645
      %v654 = vadd.f32 %v581, %v646
      %v655 = vadd.f32 %v582, %v647
      %v656 = vadd.f32 %v583, %v648
      %v657 = vadd.f32 %v584, %v649
      %v658 = vadd.f32 %v585, %v650
      %660 = vrot.lane.b32.xlu0 %v576, 32
      %v661 = vpop.permute.xlu0 %660
      %v663 = vmul.f32 %v548, %v661
      %v664 = vmul.f32 %v558, %v661
      %v665 = vmul.f32 %v553, %v661
      %v666 = vmul.f32 %v562, %v661
      %667 = vrot.lane.b32.xlu0 %v548, 92
      %v668 = vpop.permute.xlu0 %667
      %669 = vrot.lane.b32.xlu0 %v558, 92
      %v670 = vpop.permute.xlu0 %669
      %671 = vrot.lane.b32.xlu0 %v553, 92
      %v672 = vpop.permute.xlu0 %671
      %673 = vrot.lane.b32.xlu0 %v562, 92
      %v674 = vpop.permute.xlu0 %673
      %679 = vrot.lane.b32.xlu0 %v548, 100
      %v680 = vpop.permute.xlu0 %679
      %681 = vrot.lane.b32.xlu0 %v558, 100
      %v682 = vpop.permute.xlu0 %681
      %683 = vrot.lane.b32.xlu0 %v553, 100
      %v684 = vpop.permute.xlu0 %683
      %685 = vrot.lane.b32.xlu0 %v562, 100
      %v686 = vpop.permute.xlu0 %685
      %v691 = vsel %vm634, %v668, %v680
      %v692 = vsel %vm634, %v670, %v682
      %v693 = vsel %vm634, %v672, %v684
      %v694 = vsel %vm634, %v674, %v686
      %v695 = vmul.f32 %v691, %v577
      %v696 = vmul.f32 %v692, %v577
      %v697 = vmul.f32 %v693, %v577
      %v698 = vmul.f32 %v694, %v577
      %703 = vrot.lane.b32.xlu0 %v695, 32
      %v704 = vpop.permute.xlu0 %703
      %705 = vrot.lane.b32.xlu0 %v696, 32
      %v706 = vpop.permute.xlu0 %705
      %707 = vrot.lane.b32.xlu0 %v697, 32
      %v708 = vpop.permute.xlu0 %707
      %709 = vrot.lane.b32.xlu0 %v698, 32
      %v710 = vpop.permute.xlu0 %709
      %v715 = vadd.f32 %v663, %v704
      %v716 = vadd.f32 %v664, %v706
      %v717 = vadd.f32 %v665, %v708
      %v718 = vadd.f32 %v666, %v710
      %720 = vrot.lane.b32.xlu0 %v715, 96
      %v721 = vpop.permute.xlu0 %720
      %vm722 = vcmask 64512
      %v724 = vsel %vm722, %v651, 0
      %v727 = vsel %vm722, %v652, 0
      %v729 = vsel %vm722, %v721, 0
      %731 = vmatprep.subr.mxu0 0.0
      %732 = vmatpush1.xpose.msra.mxu0 0.0
      %733 = vmatprep.subr.mxu0 0.0
      %734 = vmatpush1.xpose.msra.mxu0 0.0
      %735 = vmatprep.subr.mxu0 0.0
      %736 = vmatpush1.xpose.msra.mxu0 0.0
      %737 = vmatprep.subr.mxu0 0.0
      %738 = vmatpush1.xpose.msra.mxu0 0.0
      %739 = vmatprep.subr.mxu0 0.0
      %740 = vmatpush1.xpose.msra.mxu0 0.0
      %741 = vmatprep.subr.mxu0 0.0
      %742 = vmatpush1.xpose.msra.mxu0 0.0
      %743 = vmatprep.subr.mxu0 0.0
      %744 = vmatpush1.xpose.msra.mxu0 0.0
      %745 = vmatprep.subr.mxu0 0.0
      %746 = vmatpush1.xpose.msra.mxu0 0.0
      %747 = vmatprep.subr.mxu0 0.0
      %748 = vmatpush1.xpose.msra.mxu0 0.0
      %749 = vmatprep.subr.mxu0 0.0
      %750 = vmatpush1.xpose.msra.mxu0 0.0
      %751 = vmatprep.subr.mxu0 0.0
      %752 = vmatpush1.xpose.msra.mxu0 0.0
      %753 = vmatprep.subr.mxu0 0.0
      %754 = vmatpush1.xpose.msra.mxu0 0.0
      %755 = vmatprep.subr.mxu0 0.0
      %756 = vmatpush1.xpose.msra.mxu0 0.0
      %757 = vmatprep.subr.mxu0 0.0
      %758 = vmatpush1.xpose.msra.mxu0 0.0
      %759 = vmatprep.subr.mxu0 0.0
      %760 = vmatpush1.xpose.msra.mxu0 0.0
      %761 = vmatprep.subr.mxu0 0.0
      %762 = vmatpush1.xpose.msra.mxu0 %v729
      %763 = vmatprep.subr.mxu0 0.0
      %764 = vmatpush2.xpose.msra.mxu0 0.0
      %765 = vmatprep.subr.mxu0 0.0
      %766 = vmatpush2.xpose.msra.mxu0 0.0
      %767 = vmatprep.subr.mxu0 0.0
      %768 = vmatpush2.xpose.msra.mxu0 0.0
      %769 = vmatprep.subr.mxu0 0.0
      %770 = vmatpush2.xpose.msra.mxu0 0.0
      %771 = vmatprep.subr.mxu0 0.0
      %772 = vmatpush2.xpose.msra.mxu0 0.0
      %773 = vmatprep.subr.mxu0 0.0
      %774 = vmatpush2.xpose.msra.mxu0 0.0
      %775 = vmatprep.subr.mxu0 0.0
      %776 = vmatpush2.xpose.msra.mxu0 0.0
      %777 = vmatprep.subr.mxu0 0.0
      %778 = vmatpush2.xpose.msra.mxu0 0.0
      %779 = vmatprep.subr.mxu0 0.0
      %780 = vmatpush2.xpose.msra.mxu0 0.0
      %781 = vmatprep.subr.mxu0 0.0
      %782 = vmatpush2.xpose.msra.mxu0 0.0
      %783 = vmatprep.subr.mxu0 0.0
      %784 = vmatpush2.xpose.msra.mxu0 0.0
      %785 = vmatprep.subr.mxu0 0.0
      %786 = vmatpush2.xpose.msra.mxu0 0.0
      %787 = vmatprep.subr.mxu0 0.0
      %788 = vmatpush2.xpose.msra.mxu0 0.0
      %789 = vmatprep.subr.mxu0 0.0
      %790 = vmatpush2.xpose.msra.mxu0 0.0
      %791 = vmatprep.subr.mxu0 0.0
      %792 = vmatpush2.xpose.msra.mxu0 0.0
      %793 = vmatprep.subr.mxu0 0.0
      %794 = vmatpush2.xpose.msra.mxu0 0.0
      %795 = vmatprep.mubr.f32.mxu0 0.0
      %796 = vmatmul.mubr.f32.gmra.mxu0 %v724
      %v797 = vpop.f32.mrf.mxu0
      %v798 = vadd.f32 0.0, %v797
      %v799 = vpop.f32.mrf.mxu0
      %800 = vmatprep.mubr.f32.mxu0 0.0
      %801 = vmatmul.mubr.f32.gmra.mxu0 %v727
      %v802 = vpop.f32.mrf.mxu0
      %v803 = vadd.f32 0.0, %v802
      %v804 = vpop.f32.mrf.mxu0
      %805 = vdwg.mxu0
      %807 = vrot.lane.b32.xlu0 %v716, 96
      %v808 = vpop.permute.xlu0 %807
      %v810 = vsel %vm722, %v653, 0
      %v813 = vsel %vm722, %v654, 0
      %v815 = vsel %vm722, %v808, 0
      %817 = vmatprep.subr.mxu0 0.0
      %818 = vmatpush1.xpose.msra.mxu0 0.0
      %819 = vmatprep.subr.mxu0 0.0
      %820 = vmatpush1.xpose.msra.mxu0 0.0
      %821 = vmatprep.subr.mxu0 0.0
      %822 = vmatpush1.xpose.msra.mxu0 0.0
      %823 = vmatprep.subr.mxu0 0.0
      %824 = vmatpush1.xpose.msra.mxu0 0.0
      %825 = vmatprep.subr.mxu0 0.0
      %826 = vmatpush1.xpose.msra.mxu0 0.0
      %827 = vmatprep.subr.mxu0 0.0
      %828 = vmatpush1.xpose.msra.mxu0 0.0
      %829 = vmatprep.subr.mxu0 0.0
      %830 = vmatpush1.xpose.msra.mxu0 0.0
      %831 = vmatprep.subr.mxu0 0.0
      %832 = vmatpush1.xpose.msra.mxu0 0.0
      %833 = vmatprep.subr.mxu0 0.0
      %834 = vmatpush1.xpose.msra.mxu0 0.0
      %835 = vmatprep.subr.mxu0 0.0
      %836 = vmatpush1.xpose.msra.mxu0 0.0
      %837 = vmatprep.subr.mxu0 0.0
      %838 = vmatpush1.xpose.msra.mxu0 0.0
      %839 = vmatprep.subr.mxu0 0.0
      %840 = vmatpush1.xpose.msra.mxu0 0.0
      %841 = vmatprep.subr.mxu0 0.0
      %842 = vmatpush1.xpose.msra.mxu0 0.0
      %843 = vmatprep.subr.mxu0 0.0
      %844 = vmatpush1.xpose.msra.mxu0 0.0
      %845 = vmatprep.subr.mxu0 0.0
      %846 = vmatpush1.xpose.msra.mxu0 0.0
      %847 = vmatprep.subr.mxu0 0.0
      %848 = vmatpush1.xpose.msra.mxu0 %v815
      %849 = vmatprep.subr.mxu0 0.0
      %850 = vmatpush2.xpose.msra.mxu0 0.0
      %851 = vmatprep.subr.mxu0 0.0
      %852 = vmatpush2.xpose.msra.mxu0 0.0
      %853 = vmatprep.subr.mxu0 0.0
      %854 = vmatpush2.xpose.msra.mxu0 0.0
      %855 = vmatprep.subr.mxu0 0.0
      %856 = vmatpush2.xpose.msra.mxu0 0.0
      %857 = vmatprep.subr.mxu0 0.0
      %858 = vmatpush2.xpose.msra.mxu0 0.0
      %859 = vmatprep.subr.mxu0 0.0
      %860 = vmatpush2.xpose.msra.mxu0 0.0
      %861 = vmatprep.subr.mxu0 0.0
      %862 = vmatpush2.xpose.msra.mxu0 0.0
      %863 = vmatprep.subr.mxu0 0.0
      %864 = vmatpush2.xpose.msra.mxu0 0.0
      %865 = vmatprep.subr.mxu0 0.0
      %866 = vmatpush2.xpose.msra.mxu0 0.0
      %867 = vmatprep.subr.mxu0 0.0
      %868 = vmatpush2.xpose.msra.mxu0 0.0
      %869 = vmatprep.subr.mxu0 0.0
      %870 = vmatpush2.xpose.msra.mxu0 0.0
      %871 = vmatprep.subr.mxu0 0.0
      %872 = vmatpush2.xpose.msra.mxu0 0.0
      %873 = vmatprep.subr.mxu0 0.0
      %874 = vmatpush2.xpose.msra.mxu0 0.0
      %875 = vmatprep.subr.mxu0 0.0
      %876 = vmatpush2.xpose.msra.mxu0 0.0
      %877 = vmatprep.subr.mxu0 0.0
      %878 = vmatpush2.xpose.msra.mxu0 0.0
      %879 = vmatprep.subr.mxu0 0.0
      %880 = vmatpush2.xpose.msra.mxu0 0.0
      %881 = vmatprep.mubr.f32.mxu0 0.0
      %882 = vmatmul.mubr.f32.gmra.mxu0 %v810
      %v883 = vpop.f32.mrf.mxu0
      %v884 = vadd.f32 0.0, %v883
      %v885 = vpop.f32.mrf.mxu0
      %886 = vmatprep.mubr.f32.mxu0 0.0
      %887 = vmatmul.mubr.f32.gmra.mxu0 %v813
      %v888 = vpop.f32.mrf.mxu0
      %v889 = vadd.f32 0.0, %v888
      %v890 = vpop.f32.mrf.mxu0
      %891 = vdwg.mxu0
      %893 = vrot.lane.b32.xlu0 %v717, 96
      %v894 = vpop.permute.xlu0 %893
      %v896 = vsel %vm722, %v655, 0
      %v899 = vsel %vm722, %v656, 0
      %v901 = vsel %vm722, %v894, 0
      %903 = vmatprep.subr.mxu0 0.0
      %904 = vmatpush1.xpose.msra.mxu0 0.0
      %905 = vmatprep.subr.mxu0 0.0
      %906 = vmatpush1.xpose.msra.mxu0 0.0
      %907 = vmatprep.subr.mxu0 0.0
      %908 = vmatpush1.xpose.msra.mxu0 0.0
      %909 = vmatprep.subr.mxu0 0.0
      %910 = vmatpush1.xpose.msra.mxu0 0.0
      %911 = vmatprep.subr.mxu0 0.0
      %912 = vmatpush1.xpose.msra.mxu0 0.0
      %913 = vmatprep.subr.mxu0 0.0
      %914 = vmatpush1.xpose.msra.mxu0 0.0
      %915 = vmatprep.subr.mxu0 0.0
      %916 = vmatpush1.xpose.msra.mxu0 0.0
      %917 = vmatprep.subr.mxu0 0.0
      %918 = vmatpush1.xpose.msra.mxu0 0.0
      %919 = vmatprep.subr.mxu0 0.0
      %920 = vmatpush1.xpose.msra.mxu0 0.0
      %921 = vmatprep.subr.mxu0 0.0
      %922 = vmatpush1.xpose.msra.mxu0 0.0
      %923 = vmatprep.subr.mxu0 0.0
      %924 = vmatpush1.xpose.msra.mxu0 0.0
      %925 = vmatprep.subr.mxu0 0.0
      %926 = vmatpush1.xpose.msra.mxu0 0.0
      %927 = vmatprep.subr.mxu0 0.0
      %928 = vmatpush1.xpose.msra.mxu0 0.0
      %929 = vmatprep.subr.mxu0 0.0
      %930 = vmatpush1.xpose.msra.mxu0 0.0
      %931 = vmatprep.subr.mxu0 0.0
      %932 = vmatpush1.xpose.msra.mxu0 0.0
      %933 = vmatprep.subr.mxu0 0.0
      %934 = vmatpush1.xpose.msra.mxu0 %v901
      %935 = vmatprep.subr.mxu0 0.0
      %936 = vmatpush2.xpose.msra.mxu0 0.0
      %937 = vmatprep.subr.mxu0 0.0
      %938 = vmatpush2.xpose.msra.mxu0 0.0
      %939 = vmatprep.subr.mxu0 0.0
      %940 = vmatpush2.xpose.msra.mxu0 0.0
      %941 = vmatprep.subr.mxu0 0.0
      %942 = vmatpush2.xpose.msra.mxu0 0.0
      %943 = vmatprep.subr.mxu0 0.0
      %944 = vmatpush2.xpose.msra.mxu0 0.0
      %945 = vmatprep.subr.mxu0 0.0
      %946 = vmatpush2.xpose.msra.mxu0 0.0
      %947 = vmatprep.subr.mxu0 0.0
      %948 = vmatpush2.xpose.msra.mxu0 0.0
      %949 = vmatprep.subr.mxu0 0.0
      %950 = vmatpush2.xpose.msra.mxu0 0.0
      %951 = vmatprep.subr.mxu0 0.0
      %952 = vmatpush2.xpose.msra.mxu0 0.0
      %953 = vmatprep.subr.mxu0 0.0
      %954 = vmatpush2.xpose.msra.mxu0 0.0
      %955 = vmatprep.subr.mxu0 0.0
      %956 = vmatpush2.xpose.msra.mxu0 0.0
      %957 = vmatprep.subr.mxu0 0.0
      %958 = vmatpush2.xpose.msra.mxu0 0.0
      %959 = vmatprep.subr.mxu0 0.0
      %960 = vmatpush2.xpose.msra.mxu0 0.0
      %961 = vmatprep.subr.mxu0 0.0
      %962 = vmatpush2.xpose.msra.mxu0 0.0
      %963 = vmatprep.subr.mxu0 0.0
      %964 = vmatpush2.xpose.msra.mxu0 0.0
      %965 = vmatprep.subr.mxu0 0.0
      %966 = vmatpush2.xpose.msra.mxu0 0.0
      %967 = vmatprep.mubr.f32.mxu0 0.0
      %968 = vmatmul.mubr.f32.gmra.mxu0 %v896
      %v969 = vpop.f32.mrf.mxu0
      %v970 = vadd.f32 0.0, %v969
      %v971 = vpop.f32.mrf.mxu0
      %972 = vmatprep.mubr.f32.mxu0 0.0
      %973 = vmatmul.mubr.f32.gmra.mxu0 %v899
      %v974 = vpop.f32.mrf.mxu0
      %v975 = vadd.f32 0.0, %v974
      %v976 = vpop.f32.mrf.mxu0
      %977 = vdwg.mxu0
      %979 = vrot.lane.b32.xlu0 %v718, 96
      %v980 = vpop.permute.xlu0 %979
      %v982 = vsel %vm722, %v657, 0
      %v985 = vsel %vm722, %v658, 0
      %v987 = vsel %vm722, %v980, 0
      %989 = vmatprep.subr.mxu0 0.0
      %990 = vmatpush1.xpose.msra.mxu0 0.0
      %991 = vmatprep.subr.mxu0 0.0
      %992 = vmatpush1.xpose.msra.mxu0 0.0
      %993 = vmatprep.subr.mxu0 0.0
      %994 = vmatpush1.xpose.msra.mxu0 0.0
      %995 = vmatprep.subr.mxu0 0.0
      %996 = vmatpush1.xpose.msra.mxu0 0.0
      %997 = vmatprep.subr.mxu0 0.0
      %998 = vmatpush1.xpose.msra.mxu0 0.0
      %999 = vmatprep.subr.mxu0 0.0
      %1000 = vmatpush1.xpose.msra.mxu0 0.0
      %1001 = vmatprep.subr.mxu0 0.0
      %1002 = vmatpush1.xpose.msra.mxu0 0.0
      %1003 = vmatprep.subr.mxu0 0.0
      %1004 = vmatpush1.xpose.msra.mxu0 0.0
      %1005 = vmatprep.subr.mxu0 0.0
      %1006 = vmatpush1.xpose.msra.mxu0 0.0
      %1007 = vmatprep.subr.mxu0 0.0
      %1008 = vmatpush1.xpose.msra.mxu0 0.0
      %1009 = vmatprep.subr.mxu0 0.0
      %1010 = vmatpush1.xpose.msra.mxu0 0.0
      %1011 = vmatprep.subr.mxu0 0.0
      %1012 = vmatpush1.xpose.msra.mxu0 0.0
      %1013 = vmatprep.subr.mxu0 0.0
      %1014 = vmatpush1.xpose.msra.mxu0 0.0
      %1015 = vmatprep.subr.mxu0 0.0
      %1016 = vmatpush1.xpose.msra.mxu0 0.0
      %1017 = vmatprep.subr.mxu0 0.0
      %1018 = vmatpush1.xpose.msra.mxu0 0.0
      %1019 = vmatprep.subr.mxu0 0.0
      %1020 = vmatpush1.xpose.msra.mxu0 %v987
      %1021 = vmatprep.subr.mxu0 0.0
      %1022 = vmatpush2.xpose.msra.mxu0 0.0
      %1023 = vmatprep.subr.mxu0 0.0
      %1024 = vmatpush2.xpose.msra.mxu0 0.0
      %1025 = vmatprep.subr.mxu0 0.0
      %1026 = vmatpush2.xpose.msra.mxu0 0.0
      %1027 = vmatprep.subr.mxu0 0.0
      %1028 = vmatpush2.xpose.msra.mxu0 0.0
      %1029 = vmatprep.subr.mxu0 0.0
      %1030 = vmatpush2.xpose.msra.mxu0 0.0
      %1031 = vmatprep.subr.mxu0 0.0
      %1032 = vmatpush2.xpose.msra.mxu0 0.0
      %1033 = vmatprep.subr.mxu0 0.0
      %1034 = vmatpush2.xpose.msra.mxu0 0.0
      %1035 = vmatprep.subr.mxu0 0.0
      %1036 = vmatpush2.xpose.msra.mxu0 0.0
      %1037 = vmatprep.subr.mxu0 0.0
      %1038 = vmatpush2.xpose.msra.mxu0 0.0
      %1039 = vmatprep.subr.mxu0 0.0
      %1040 = vmatpush2.xpose.msra.mxu0 0.0
      %1041 = vmatprep.subr.mxu0 0.0
      %1042 = vmatpush2.xpose.msra.mxu0 0.0
      %1043 = vmatprep.subr.mxu0 0.0
      %1044 = vmatpush2.xpose.msra.mxu0 0.0
      %1045 = vmatprep.subr.mxu0 0.0
      %1046 = vmatpush2.xpose.msra.mxu0 0.0
      %1047 = vmatprep.subr.mxu0 0.0
      %1048 = vmatpush2.xpose.msra.mxu0 0.0
      %1049 = vmatprep.subr.mxu0 0.0
      %1050 = vmatpush2.xpose.msra.mxu0 0.0
      %1051 = vmatprep.subr.mxu0 0.0
      %1052 = vmatpush2.xpose.msra.mxu0 0.0
      %1053 = vmatprep.mubr.f32.mxu0 0.0
      %1054 = vmatmul.mubr.f32.gmra.mxu0 %v982
      %v1055 = vpop.f32.mrf.mxu0
      %v1056 = vadd.f32 0.0, %v1055
      %v1057 = vpop.f32.mrf.mxu0
      %1058 = vmatprep.mubr.f32.mxu0 0.0
      %1059 = vmatmul.mubr.f32.gmra.mxu0 %v985
      %v1060 = vpop.f32.mrf.mxu0
      %v1061 = vadd.f32 0.0, %v1060
      %v1062 = vpop.f32.mrf.mxu0
      %1063 = vdwg.mxu0
      %v1064 = vlaneseq
      %v1065 = vshrl.u32 %v1064, 7
      %v1066 = vlaneseq
      %v1067 = vand.u32 %v1066, 127
      %vm1068 = vcmp.le.s32.totalorder %v1067, %v1065
      %v1069 = vsel %vm1068, 1, 0
      %vm1070 = vcmp.eq.s32.totalorder %v1069, 1
      %v1071 = vsel %vm1070, %v798, -1e+30
      %v1072 = vsel %vm1070, %v803, -1e+30
      %v1073 = vsel %vm1070, %v884, -1e+30
      %v1074 = vsel %vm1070, %v889, -1e+30
      %v1075 = vsel %vm1070, %v970, -1e+30
      %v1076 = vsel %vm1070, %v975, -1e+30
      %v1077 = vsel %vm1070, %v1056, -1e+30
      %v1078 = vsel %vm1070, %v1061, -1e+30
      %v1079 = vsel %vm722, %v1071, -inf
      %1080 = vmax.xlane.f32.xlu0 %v1079
      %v1081 = vpop.xlane.xlu0 %1080
      %v1082 = vsel %vm722, %v1072, -inf
      %1083 = vmax.xlane.f32.xlu0 %v1082
      %v1084 = vpop.xlane.xlu0 %1083
      %v1085 = vsel %vm722, %v1073, -inf
      %1086 = vmax.xlane.f32.xlu0 %v1085
      %v1087 = vpop.xlane.xlu0 %1086
      %v1088 = vsel %vm722, %v1074, -inf
      %1089 = vmax.xlane.f32.xlu0 %v1088
      %v1090 = vpop.xlane.xlu0 %1089
      %v1091 = vsel %vm722, %v1075, -inf
      %1092 = vmax.xlane.f32.xlu0 %v1091
      %v1093 = vpop.xlane.xlu0 %1092
      %v1094 = vsel %vm722, %v1076, -inf
      %1095 = vmax.xlane.f32.xlu0 %v1094
      %v1096 = vpop.xlane.xlu0 %1095
      %v1097 = vsel %vm722, %v1077, -inf
      %1098 = vmax.xlane.f32.xlu0 %v1097
      %v1099 = vpop.xlane.xlu0 %1098
      %v1100 = vsel %vm722, %v1078, -inf
      %1101 = vmax.xlane.f32.xlu0 %v1100
      %v1102 = vpop.xlane.xlu0 %1101
      %v1103 = vsub.f32 %v1071, %v1081
      %v1104 = vsub.f32 %v1072, %v1084
      %v1105 = vsub.f32 %v1073, %v1087
      %v1106 = vsub.f32 %v1074, %v1090
      %v1107 = vsub.f32 %v1075, %v1093
      %v1108 = vsub.f32 %v1076, %v1096
      %v1109 = vsub.f32 %v1077, %v1099
      %v1110 = vsub.f32 %v1078, %v1102
      %v1111 = vmul.f32 %v1103, 1.442695
      %v1112 = vpow.pop %v1111
      %v1113 = vmul.f32 %v1104, 1.442695
      %v1114 = vpow.pop %v1113
      %v1115 = vmul.f32 %v1105, 1.442695
      %v1116 = vpow.pop %v1115
      %v1117 = vmul.f32 %v1106, 1.442695
      %v1118 = vpow.pop %v1117
      %v1119 = vmul.f32 %v1107, 1.442695
      %v1120 = vpow.pop %v1119
      %v1121 = vmul.f32 %v1108, 1.442695
      %v1122 = vpow.pop %v1121
      %v1123 = vmul.f32 %v1109, 1.442695
      %v1124 = vpow.pop %v1123
      %v1125 = vmul.f32 %v1110, 1.442695
      %v1126 = vpow.pop %v1125
      %v1127 = vsel %vm722, %v1112, 0.0
      %1128 = vadd.xlane.f32.xlu0 %v1127
      %v1129 = vpop.xlane.xlu0 %1128
      %v1130 = vsel %vm722, %v1114, 0.0
      %1131 = vadd.xlane.f32.xlu0 %v1130
      %v1132 = vpop.xlane.xlu0 %1131
      %v1133 = vsel %vm722, %v1116, 0.0
      %1134 = vadd.xlane.f32.xlu0 %v1133
      %v1135 = vpop.xlane.xlu0 %1134
      %v1136 = vsel %vm722, %v1118, 0.0
      %1137 = vadd.xlane.f32.xlu0 %v1136
      %v1138 = vpop.xlane.xlu0 %1137
      %v1139 = vsel %vm722, %v1120, 0.0
      %1140 = vadd.xlane.f32.xlu0 %v1139
      %v1141 = vpop.xlane.xlu0 %1140
      %v1142 = vsel %vm722, %v1122, 0.0
      %1143 = vadd.xlane.f32.xlu0 %v1142
      %v1144 = vpop.xlane.xlu0 %1143
      %v1145 = vsel %vm722, %v1124, 0.0
      %1146 = vadd.xlane.f32.xlu0 %v1145
      %v1147 = vpop.xlane.xlu0 %1146
      %v1148 = vsel %vm722, %v1126, 0.0
      %1149 = vadd.xlane.f32.xlu0 %v1148
      %v1150 = vpop.xlane.xlu0 %1149
      %v1151 = vrcp.pop %v1129
      %v1152 = vrcp.pop %v1132
      %v1153 = vrcp.pop %v1135
      %v1154 = vrcp.pop %v1138
      %v1155 = vrcp.pop %v1141
      %v1156 = vrcp.pop %v1144
      %v1157 = vrcp.pop %v1147
      %v1158 = vrcp.pop %v1150
      %v1159 = vmul.f32 %v1112, %v1151
      %v1160 = vmul.f32 %v1114, %v1152
      %v1161 = vmul.f32 %v1116, %v1153
      %v1162 = vmul.f32 %v1118, %v1154
      %v1163 = vmul.f32 %v1120, %v1155
      %v1164 = vmul.f32 %v1122, %v1156
      %v1165 = vmul.f32 %v1124, %v1157
      %v1166 = vmul.f32 %v1126, %v1158
      %1167 = vrot.lane.b32.xlu0 %v548, 80
      %v1168 = vpop.permute.xlu0 %1167
      %v1171 = vsel %vm722, %v1159, 0
      %v1174 = vsel %vm722, %v1160, 0
      %1176 = vmatprep.subr.mxu0 0.0
      %1177 = vmatpush1.msra.mxu0 0.0
      %1178 = vmatprep.subr.mxu0 0.0
      %1179 = vmatpush1.msra.mxu0 0.0
      %1180 = vmatprep.subr.mxu0 0.0
      %1181 = vmatpush1.msra.mxu0 0.0
      %1182 = vmatprep.subr.mxu0 0.0
      %1183 = vmatpush1.msra.mxu0 0.0
      %1184 = vmatprep.subr.mxu0 0.0
      %1185 = vmatpush1.msra.mxu0 0.0
      %1186 = vmatprep.subr.mxu0 0.0
      %1187 = vmatpush1.msra.mxu0 0.0
      %1188 = vmatprep.subr.mxu0 0.0
      %1189 = vmatpush1.msra.mxu0 0.0
      %1190 = vmatprep.subr.mxu0 0.0
      %1191 = vmatpush1.msra.mxu0 0.0
      %1192 = vmatprep.subr.mxu0 0.0
      %1193 = vmatpush1.msra.mxu0 0.0
      %1194 = vmatprep.subr.mxu0 0.0
      %1195 = vmatpush1.msra.mxu0 0.0
      %1196 = vmatprep.subr.mxu0 0.0
      %1197 = vmatpush1.msra.mxu0 0.0
      %1198 = vmatprep.subr.mxu0 0.0
      %1199 = vmatpush1.msra.mxu0 0.0
      %1200 = vmatprep.subr.mxu0 0.0
      %1201 = vmatpush1.msra.mxu0 0.0
      %1202 = vmatprep.subr.mxu0 0.0
      %1203 = vmatpush1.msra.mxu0 0.0
      %1204 = vmatprep.subr.mxu0 0.0
      %1205 = vmatpush1.msra.mxu0 0.0
      %1206 = vmatprep.subr.mxu0 0.0
      %1207 = vmatpush1.msra.mxu0 %v1168
      %1208 = vmatprep.subr.mxu0 0.0
      %1209 = vmatpush2.msra.mxu0 0.0
      %1210 = vmatprep.subr.mxu0 0.0
      %1211 = vmatpush2.msra.mxu0 0.0
      %1212 = vmatprep.subr.mxu0 0.0
      %1213 = vmatpush2.msra.mxu0 0.0
      %1214 = vmatprep.subr.mxu0 0.0
      %1215 = vmatpush2.msra.mxu0 0.0
      %1216 = vmatprep.subr.mxu0 0.0
      %1217 = vmatpush2.msra.mxu0 0.0
      %1218 = vmatprep.subr.mxu0 0.0
      %1219 = vmatpush2.msra.mxu0 0.0
      %1220 = vmatprep.subr.mxu0 0.0
      %1221 = vmatpush2.msra.mxu0 0.0
      %1222 = vmatprep.subr.mxu0 0.0
      %1223 = vmatpush2.msra.mxu0 0.0
      %1224 = vmatprep.subr.mxu0 0.0
      %1225 = vmatpush2.msra.mxu0 0.0
      %1226 = vmatprep.subr.mxu0 0.0
      %1227 = vmatpush2.msra.mxu0 0.0
      %1228 = vmatprep.subr.mxu0 0.0
      %1229 = vmatpush2.msra.mxu0 0.0
      %1230 = vmatprep.subr.mxu0 0.0
      %1231 = vmatpush2.msra.mxu0 0.0
      %1232 = vmatprep.subr.mxu0 0.0
      %1233 = vmatpush2.msra.mxu0 0.0
      %1234 = vmatprep.subr.mxu0 0.0
      %1235 = vmatpush2.msra.mxu0 0.0
      %1236 = vmatprep.subr.mxu0 0.0
      %1237 = vmatpush2.msra.mxu0 0.0
      %1238 = vmatprep.subr.mxu0 0.0
      %1239 = vmatpush2.msra.mxu0 0.0
      %1240 = vmatprep.mubr.f32.mxu0 0.0
      %1241 = vmatmul.mubr.f32.gmra.mxu0 %v1171
      %v1242 = vpop.f32.mrf.mxu0
      %v1243 = vadd.f32 0.0, %v1242
      %v1244 = vpop.f32.mrf.mxu0
      %1245 = vmatprep.mubr.f32.mxu0 0.0
      %1246 = vmatmul.mubr.f32.gmra.mxu0 %v1174
      %v1247 = vpop.f32.mrf.mxu0
      %v1248 = vadd.f32 0.0, %v1247
      %v1249 = vpop.f32.mrf.mxu0
      %1250 = vdwg.mxu0
      %1251 = vrot.lane.b32.xlu0 %v558, 80
      %v1252 = vpop.permute.xlu0 %1251
      %v1255 = vsel %vm722, %v1161, 0
      %v1258 = vsel %vm722, %v1162, 0
      %1260 = vmatprep.subr.mxu0 0.0
      %1261 = vmatpush1.msra.mxu0 0.0
      %1262 = vmatprep.subr.mxu0 0.0
      %1263 = vmatpush1.msra.mxu0 0.0
      %1264 = vmatprep.subr.mxu0 0.0
      %1265 = vmatpush1.msra.mxu0 0.0
      %1266 = vmatprep.subr.mxu0 0.0
      %1267 = vmatpush1.msra.mxu0 0.0
      %1268 = vmatprep.subr.mxu0 0.0
      %1269 = vmatpush1.msra.mxu0 0.0
      %1270 = vmatprep.subr.mxu0 0.0
      %1271 = vmatpush1.msra.mxu0 0.0
      %1272 = vmatprep.subr.mxu0 0.0
      %1273 = vmatpush1.msra.mxu0 0.0
      %1274 = vmatprep.subr.mxu0 0.0
      %1275 = vmatpush1.msra.mxu0 0.0
      %1276 = vmatprep.subr.mxu0 0.0
      %1277 = vmatpush1.msra.mxu0 0.0
      %1278 = vmatprep.subr.mxu0 0.0
      %1279 = vmatpush1.msra.mxu0 0.0
      %1280 = vmatprep.subr.mxu0 0.0
      %1281 = vmatpush1.msra.mxu0 0.0
      %1282 = vmatprep.subr.mxu0 0.0
      %1283 = vmatpush1.msra.mxu0 0.0
      %1284 = vmatprep.subr.mxu0 0.0
      %1285 = vmatpush1.msra.mxu0 0.0
      %1286 = vmatprep.subr.mxu0 0.0
      %1287 = vmatpush1.msra.mxu0 0.0
      %1288 = vmatprep.subr.mxu0 0.0
      %1289 = vmatpush1.msra.mxu0 0.0
      %1290 = vmatprep.subr.mxu0 0.0
      %1291 = vmatpush1.msra.mxu0 %v1252
      %1292 = vmatprep.subr.mxu0 0.0
      %1293 = vmatpush2.msra.mxu0 0.0
      %1294 = vmatprep.subr.mxu0 0.0
      %1295 = vmatpush2.msra.mxu0 0.0
      %1296 = vmatprep.subr.mxu0 0.0
      %1297 = vmatpush2.msra.mxu0 0.0
      %1298 = vmatprep.subr.mxu0 0.0
      %1299 = vmatpush2.msra.mxu0 0.0
      %1300 = vmatprep.subr.mxu0 0.0
      %1301 = vmatpush2.msra.mxu0 0.0
      %1302 = vmatprep.subr.mxu0 0.0
      %1303 = vmatpush2.msra.mxu0 0.0
      %1304 = vmatprep.subr.mxu0 0.0
      %1305 = vmatpush2.msra.mxu0 0.0
      %1306 = vmatprep.subr.mxu0 0.0
      %1307 = vmatpush2.msra.mxu0 0.0
      %1308 = vmatprep.subr.mxu0 0.0
      %1309 = vmatpush2.msra.mxu0 0.0
      %1310 = vmatprep.subr.mxu0 0.0
      %1311 = vmatpush2.msra.mxu0 0.0
      %1312 = vmatprep.subr.mxu0 0.0
      %1313 = vmatpush2.msra.mxu0 0.0
      %1314 = vmatprep.subr.mxu0 0.0
      %1315 = vmatpush2.msra.mxu0 0.0
      %1316 = vmatprep.subr.mxu0 0.0
      %1317 = vmatpush2.msra.mxu0 0.0
      %1318 = vmatprep.subr.mxu0 0.0
      %1319 = vmatpush2.msra.mxu0 0.0
      %1320 = vmatprep.subr.mxu0 0.0
      %1321 = vmatpush2.msra.mxu0 0.0
      %1322 = vmatprep.subr.mxu0 0.0
      %1323 = vmatpush2.msra.mxu0 0.0
      %1324 = vmatprep.mubr.f32.mxu0 0.0
      %1325 = vmatmul.mubr.f32.gmra.mxu0 %v1255
      %v1326 = vpop.f32.mrf.mxu0
      %v1327 = vadd.f32 0.0, %v1326
      %v1328 = vpop.f32.mrf.mxu0
      %1329 = vmatprep.mubr.f32.mxu0 0.0
      %1330 = vmatmul.mubr.f32.gmra.mxu0 %v1258
      %v1331 = vpop.f32.mrf.mxu0
      %v1332 = vadd.f32 0.0, %v1331
      %v1333 = vpop.f32.mrf.mxu0
      %1334 = vdwg.mxu0
      %1335 = vrot.lane.b32.xlu0 %v553, 80
      %v1336 = vpop.permute.xlu0 %1335
      %v1339 = vsel %vm722, %v1163, 0
      %v1342 = vsel %vm722, %v1164, 0
      %1344 = vmatprep.subr.mxu0 0.0
      %1345 = vmatpush1.msra.mxu0 0.0
      %1346 = vmatprep.subr.mxu0 0.0
      %1347 = vmatpush1.msra.mxu0 0.0
      %1348 = vmatprep.subr.mxu0 0.0
      %1349 = vmatpush1.msra.mxu0 0.0
      %1350 = vmatprep.subr.mxu0 0.0
      %1351 = vmatpush1.msra.mxu0 0.0
      %1352 = vmatprep.subr.mxu0 0.0
      %1353 = vmatpush1.msra.mxu0 0.0
      %1354 = vmatprep.subr.mxu0 0.0
      %1355 = vmatpush1.msra.mxu0 0.0
      %1356 = vmatprep.subr.mxu0 0.0
      %1357 = vmatpush1.msra.mxu0 0.0
      %1358 = vmatprep.subr.mxu0 0.0
      %1359 = vmatpush1.msra.mxu0 0.0
      %1360 = vmatprep.subr.mxu0 0.0
      %1361 = vmatpush1.msra.mxu0 0.0
      %1362 = vmatprep.subr.mxu0 0.0
      %1363 = vmatpush1.msra.mxu0 0.0
      %1364 = vmatprep.subr.mxu0 0.0
      %1365 = vmatpush1.msra.mxu0 0.0
      %1366 = vmatprep.subr.mxu0 0.0
      %1367 = vmatpush1.msra.mxu0 0.0
      %1368 = vmatprep.subr.mxu0 0.0
      %1369 = vmatpush1.msra.mxu0 0.0
      %1370 = vmatprep.subr.mxu0 0.0
      %1371 = vmatpush1.msra.mxu0 0.0
      %1372 = vmatprep.subr.mxu0 0.0
      %1373 = vmatpush1.msra.mxu0 0.0
      %1374 = vmatprep.subr.mxu0 0.0
      %1375 = vmatpush1.msra.mxu0 %v1336
      %1376 = vmatprep.subr.mxu0 0.0
      %1377 = vmatpush2.msra.mxu0 0.0
      %1378 = vmatprep.subr.mxu0 0.0
      %1379 = vmatpush2.msra.mxu0 0.0
      %1380 = vmatprep.subr.mxu0 0.0
      %1381 = vmatpush2.msra.mxu0 0.0
      %1382 = vmatprep.subr.mxu0 0.0
      %1383 = vmatpush2.msra.mxu0 0.0
      %1384 = vmatprep.subr.mxu0 0.0
      %1385 = vmatpush2.msra.mxu0 0.0
      %1386 = vmatprep.subr.mxu0 0.0
      %1387 = vmatpush2.msra.mxu0 0.0
      %1388 = vmatprep.subr.mxu0 0.0
      %1389 = vmatpush2.msra.mxu0 0.0
      %1390 = vmatprep.subr.mxu0 0.0
      %1391 = vmatpush2.msra.mxu0 0.0
      %1392 = vmatprep.subr.mxu0 0.0
      %1393 = vmatpush2.msra.mxu0 0.0
      %1394 = vmatprep.subr.mxu0 0.0
      %1395 = vmatpush2.msra.mxu0 0.0
      %1396 = vmatprep.subr.mxu0 0.0
      %1397 = vmatpush2.msra.mxu0 0.0
      %1398 = vmatprep.subr.mxu0 0.0
      %1399 = vmatpush2.msra.mxu0 0.0
      %1400 = vmatprep.subr.mxu0 0.0
      %1401 = vmatpush2.msra.mxu0 0.0
      %1402 = vmatprep.subr.mxu0 0.0
      %1403 = vmatpush2.msra.mxu0 0.0
      %1404 = vmatprep.subr.mxu0 0.0
      %1405 = vmatpush2.msra.mxu0 0.0
      %1406 = vmatprep.subr.mxu0 0.0
      %1407 = vmatpush2.msra.mxu0 0.0
      %1408 = vmatprep.mubr.f32.mxu0 0.0
      %1409 = vmatmul.mubr.f32.gmra.mxu0 %v1339
      %v1410 = vpop.f32.mrf.mxu0
      %v1411 = vadd.f32 0.0, %v1410
      %v1412 = vpop.f32.mrf.mxu0
      %1413 = vmatprep.mubr.f32.mxu0 0.0
      %1414 = vmatmul.mubr.f32.gmra.mxu0 %v1342
      %v1415 = vpop.f32.mrf.mxu0
      %v1416 = vadd.f32 0.0, %v1415
      %v1417 = vpop.f32.mrf.mxu0
      %1418 = vdwg.mxu0
      %1419 = vrot.lane.b32.xlu0 %v562, 80
      %v1420 = vpop.permute.xlu0 %1419
      %v1423 = vsel %vm722, %v1165, 0
      %v1426 = vsel %vm722, %v1166, 0
      %1428 = vmatprep.subr.mxu0 0.0
      %1429 = vmatpush1.msra.mxu0 0.0
      %1430 = vmatprep.subr.mxu0 0.0
      %1431 = vmatpush1.msra.mxu0 0.0
      %1432 = vmatprep.subr.mxu0 0.0
      %1433 = vmatpush1.msra.mxu0 0.0
      %1434 = vmatprep.subr.mxu0 0.0
      %1435 = vmatpush1.msra.mxu0 0.0
      %1436 = vmatprep.subr.mxu0 0.0
      %1437 = vmatpush1.msra.mxu0 0.0
      %1438 = vmatprep.subr.mxu0 0.0
      %1439 = vmatpush1.msra.mxu0 0.0
      %1440 = vmatprep.subr.mxu0 0.0
      %1441 = vmatpush1.msra.mxu0 0.0
      %1442 = vmatprep.subr.mxu0 0.0
      %1443 = vmatpush1.msra.mxu0 0.0
      %1444 = vmatprep.subr.mxu0 0.0
      %1445 = vmatpush1.msra.mxu0 0.0
      %1446 = vmatprep.subr.mxu0 0.0
      %1447 = vmatpush1.msra.mxu0 0.0
      %1448 = vmatprep.subr.mxu0 0.0
      %1449 = vmatpush1.msra.mxu0 0.0
      %1450 = vmatprep.subr.mxu0 0.0
      %1451 = vmatpush1.msra.mxu0 0.0
      %1452 = vmatprep.subr.mxu0 0.0
      %1453 = vmatpush1.msra.mxu0 0.0
      %1454 = vmatprep.subr.mxu0 0.0
      %1455 = vmatpush1.msra.mxu0 0.0
      %1456 = vmatprep.subr.mxu0 0.0
      %1457 = vmatpush1.msra.mxu0 0.0
      %1458 = vmatprep.subr.mxu0 0.0
      %1459 = vmatpush1.msra.mxu0 %v1420
      %1460 = vmatprep.subr.mxu0 0.0
      %1461 = vmatpush2.msra.mxu0 0.0
      %1462 = vmatprep.subr.mxu0 0.0
      %1463 = vmatpush2.msra.mxu0 0.0
      %1464 = vmatprep.subr.mxu0 0.0
      %1465 = vmatpush2.msra.mxu0 0.0
      %1466 = vmatprep.subr.mxu0 0.0
      %1467 = vmatpush2.msra.mxu0 0.0
      %1468 = vmatprep.subr.mxu0 0.0
      %1469 = vmatpush2.msra.mxu0 0.0
      %1470 = vmatprep.subr.mxu0 0.0
      %1471 = vmatpush2.msra.mxu0 0.0
      %1472 = vmatprep.subr.mxu0 0.0
      %1473 = vmatpush2.msra.mxu0 0.0
      %1474 = vmatprep.subr.mxu0 0.0
      %1475 = vmatpush2.msra.mxu0 0.0
      %1476 = vmatprep.subr.mxu0 0.0
      %1477 = vmatpush2.msra.mxu0 0.0
      %1478 = vmatprep.subr.mxu0 0.0
      %1479 = vmatpush2.msra.mxu0 0.0
      %1480 = vmatprep.subr.mxu0 0.0
      %1481 = vmatpush2.msra.mxu0 0.0
      %1482 = vmatprep.subr.mxu0 0.0
      %1483 = vmatpush2.msra.mxu0 0.0
      %1484 = vmatprep.subr.mxu0 0.0
      %1485 = vmatpush2.msra.mxu0 0.0
      %1486 = vmatprep.subr.mxu0 0.0
      %1487 = vmatpush2.msra.mxu0 0.0
      %1488 = vmatprep.subr.mxu0 0.0
      %1489 = vmatpush2.msra.mxu0 0.0
      %1490 = vmatprep.subr.mxu0 0.0
      %1491 = vmatpush2.msra.mxu0 0.0
      %1492 = vmatprep.mubr.f32.mxu0 0.0
      %1493 = vmatmul.mubr.f32.gmra.mxu0 %v1423
      %v1494 = vpop.f32.mrf.mxu0
      %v1495 = vadd.f32 0.0, %v1494
      %v1496 = vpop.f32.mrf.mxu0
      %1497 = vmatprep.mubr.f32.mxu0 0.0
      %1498 = vmatmul.mubr.f32.gmra.mxu0 %v1426
      %v1499 = vpop.f32.mrf.mxu0
      %v1500 = vadd.f32 0.0, %v1499
      %v1501 = vpop.f32.mrf.mxu0
      %1502 = vdwg.mxu0
      %1504 = vrot.lane.b32.xlu0 %v1248, 8
      %v1505 = vpop.permute.xlu0 %1504
      %1508 = vrot.lane.b32.xlu0 %v1327, 16
      %v1509 = vpop.permute.xlu0 %1508
      %1512 = vrot.lane.b32.xlu0 %v1332, 24
      %v1513 = vpop.permute.xlu0 %1512
      %v1515 = vsel %vm722, %v1243, %v1505
      %vm1516 = vcmask 130048
      %v1517 = vsel %vm1516, %v1515, %v1509
      %vm1518 = vcmask 195584
      %v1519 = vsel %vm1518, %v1517, %v1513
      %1521 = vrot.lane.b32.xlu0 %v1416, 8
      %v1522 = vpop.permute.xlu0 %1521
      %1525 = vrot.lane.b32.xlu0 %v1495, 16
      %v1526 = vpop.permute.xlu0 %1525
      %1529 = vrot.lane.b32.xlu0 %v1500, 24
      %v1530 = vpop.permute.xlu0 %1529
      %v1532 = vsel %vm722, %v1411, %v1522
      %v1533 = vsel %vm1516, %v1532, %v1526
      %v1534 = vsel %vm1518, %v1533, %v1530
      %v1535 = vld [vmem:[%s422] sm:$0xff]
      %v1536 = vld [vmem:[%s422 + $0x8] sm:$0xff]
      %v1537 = vld [vmem:[%s422 + $0x10] sm:$0xff]
      %v1538 = vld [vmem:[%s422 + $0x18] sm:$0xff]
      %v1540 = vsel %vm446, %v1519, 0
      %v1543 = vsel %vm446, %v1534, 0
      %1545 = vmatprep.subr.mxu0 0.0
      %1546 = vmatpush1.msra.mxu0 0.0
      %1547 = vmatprep.subr.mxu0 0.0
      %1548 = vmatpush1.msra.mxu0 0.0
      %1549 = vmatprep.subr.mxu0 0.0
      %1550 = vmatpush1.msra.mxu0 0.0
      %1551 = vmatprep.subr.mxu0 0.0
      %1552 = vmatpush1.msra.mxu0 0.0
      %1553 = vmatprep.subr.mxu0 0.0
      %1554 = vmatpush1.msra.mxu0 0.0
      %1555 = vmatprep.subr.mxu0 0.0
      %1556 = vmatpush1.msra.mxu0 0.0
      %1557 = vmatprep.subr.mxu0 0.0
      %1558 = vmatpush1.msra.mxu0 0.0
      %1559 = vmatprep.subr.mxu0 0.0
      %1560 = vmatpush1.msra.mxu0 0.0
      %1561 = vmatprep.subr.mxu0 0.0
      %1562 = vmatpush1.msra.mxu0 0.0
      %1563 = vmatprep.subr.mxu0 0.0
      %1564 = vmatpush1.msra.mxu0 0.0
      %1565 = vmatprep.subr.mxu0 0.0
      %1566 = vmatpush1.msra.mxu0 0.0
      %1567 = vmatprep.subr.mxu0 0.0
      %1568 = vmatpush1.msra.mxu0 0.0
      %1569 = vmatprep.subr.mxu0 0.0
      %1570 = vmatpush1.msra.mxu0 %v1538
      %1571 = vmatprep.subr.mxu0 0.0
      %1572 = vmatpush1.msra.mxu0 %v1537
      %1573 = vmatprep.subr.mxu0 0.0
      %1574 = vmatpush1.msra.mxu0 %v1536
      %1575 = vmatprep.subr.mxu0 0.0
      %1576 = vmatpush1.msra.mxu0 %v1535
      %1577 = vmatprep.subr.mxu0 0.0
      %1578 = vmatpush2.msra.mxu0 0.0
      %1579 = vmatprep.subr.mxu0 0.0
      %1580 = vmatpush2.msra.mxu0 0.0
      %1581 = vmatprep.subr.mxu0 0.0
      %1582 = vmatpush2.msra.mxu0 0.0
      %1583 = vmatprep.subr.mxu0 0.0
      %1584 = vmatpush2.msra.mxu0 0.0
      %1585 = vmatprep.subr.mxu0 0.0
      %1586 = vmatpush2.msra.mxu0 0.0
      %1587 = vmatprep.subr.mxu0 0.0
      %1588 = vmatpush2.msra.mxu0 0.0
      %1589 = vmatprep.subr.mxu0 0.0
      %1590 = vmatpush2.msra.mxu0 0.0
      %1591 = vmatprep.subr.mxu0 0.0
      %1592 = vmatpush2.msra.mxu0 0.0
      %1593 = vmatprep.subr.mxu0 0.0
      %1594 = vmatpush2.msra.mxu0 0.0
      %1595 = vmatprep.subr.mxu0 0.0
      %1596 = vmatpush2.msra.mxu0 0.0
      %1597 = vmatprep.subr.mxu0 0.0
      %1598 = vmatpush2.msra.mxu0 0.0
      %1599 = vmatprep.subr.mxu0 0.0
      %1600 = vmatpush2.msra.mxu0 0.0
      %1601 = vmatprep.subr.mxu0 0.0
      %1602 = vmatpush2.msra.mxu0 0.0
      %1603 = vmatprep.subr.mxu0 0.0
      %1604 = vmatpush2.msra.mxu0 0.0
      %1605 = vmatprep.subr.mxu0 0.0
      %1606 = vmatpush2.msra.mxu0 0.0
      %1607 = vmatprep.subr.mxu0 0.0
      %1608 = vmatpush2.msra.mxu0 0.0
      %1609 = vmatprep.mubr.f32.mxu0 0.0
      %1610 = vmatmul.mubr.f32.gmra.mxu0 %v1540
      %v1611 = vpop.f32.mrf.mxu0
      %v1612 = vadd.f32 0.0, %v1611
      %v1613 = vpop.f32.mrf.mxu0
      %1614 = vmatprep.mubr.f32.mxu0 0.0
      %1615 = vmatmul.mubr.f32.gmra.mxu0 %v1543
      %v1616 = vpop.f32.mrf.mxu0
      %v1617 = vadd.f32 0.0, %v1616
      %v1618 = vpop.f32.mrf.mxu0
      %1619 = vdwg.mxu0
      %v1620 = vadd.f32 %v442, %v1612
      %v1621 = vadd.f32 %v443, %v1617
      %v1622 = vmul.f32 %v1620, %v1620
      %v1623 = vmul.f32 %v1621, %v1621
      %v1624 = vsel %vm446, %v1622, 0.0
      %1625 = vadd.xlane.f32.xlu0 %v1624
      %v1626 = vpop.xlane.xlu0 %1625
      %v1627 = vsel %vm446, %v1623, 0.0
      %1628 = vadd.xlane.f32.xlu0 %v1627
      %v1629 = vpop.xlane.xlu0 %1628
      %v1630 = vmul.f32 %v1626, %v453
      %v1631 = vmul.f32 %v1629, %v453
      %v1632 = vadd.f32 %v1630, 1e-05
      %v1633 = vadd.f32 %v1631, 1e-05
      %v1634 = vrsqrt.pop %v1632
      %v1635 = vrsqrt.pop %v1633
      %v1636 = vmul.f32 %v1620, %v1634
      %v1637 = vmul.f32 %v1621, %v1635
      %v1638 = vld [vmem:[%s412] sm:$0x1]
      %v1640 = vlaneseq
      %v1641 = vshrl.u32 %v1640, 7
      %v1642 = vsub.s32 0, %v1641
      %v1643 = vrot.slane %v1638, %v1642
      %v1645 = vmul.f32 %v1636, %v1643
      %v1646 = vmul.f32 %v1637, %v1643
      %v1647 = vld [vmem:[%s427] sm:$0xff]
      %v1648 = vld [vmem:[%s427 + $0x8] sm:$0xff]
      %v1649 = vld [vmem:[%s427 + $0x10] sm:$0xff]
      %v1650 = vld [vmem:[%s427 + $0x18] sm:$0xff]
      %v1652 = vsel %vm446, %v1645, 0
      %v1655 = vsel %vm446, %v1646, 0
      %1657 = vmatprep.subr.mxu0 0.0
      %1658 = vmatpush1.msra.mxu0 0.0
      %1659 = vmatprep.subr.mxu0 0.0
      %1660 = vmatpush1.msra.mxu0 0.0
      %1661 = vmatprep.subr.mxu0 0.0
      %1662 = vmatpush1.msra.mxu0 0.0
      %1663 = vmatprep.subr.mxu0 0.0
      %1664 = vmatpush1.msra.mxu0 0.0
      %1665 = vmatprep.subr.mxu0 0.0
      %1666 = vmatpush1.msra.mxu0 0.0
      %1667 = vmatprep.subr.mxu0 0.0
      %1668 = vmatpush1.msra.mxu0 0.0
      %1669 = vmatprep.subr.mxu0 0.0
      %1670 = vmatpush1.msra.mxu0 0.0
      %1671 = vmatprep.subr.mxu0 0.0
      %1672 = vmatpush1.msra.mxu0 0.0
      %1673 = vmatprep.subr.mxu0 0.0
      %1674 = vmatpush1.msra.mxu0 0.0
      %1675 = vmatprep.subr.mxu0 0.0
      %1676 = vmatpush1.msra.mxu0 0.0
      %1677 = vmatprep.subr.mxu0 0.0
      %1678 = vmatpush1.msra.mxu0 0.0
      %1679 = vmatprep.subr.mxu0 0.0
      %1680 = vmatpush1.msra.mxu0 0.0
      %1681 = vmatprep.subr.mxu0 0.0
      %1682 = vmatpush1.msra.mxu0 %v1650
      %1683 = vmatprep.subr.mxu0 0.0
      %1684 = vmatpush1.msra.mxu0 %v1649
      %1685 = vmatprep.subr.mxu0 0.0
      %1686 = vmatpush1.msra.mxu0 %v1648
      %1687 = vmatprep.subr.mxu0 0.0
      %1688 = vmatpush1.msra.mxu0 %v1647
      %1689 = vmatprep.subr.mxu0 0.0
      %1690 = vmatpush2.msra.mxu0 0.0
      %1691 = vmatprep.subr.mxu0 0.0
      %1692 = vmatpush2.msra.mxu0 0.0
      %1693 = vmatprep.subr.mxu0 0.0
      %1694 = vmatpush2.msra.mxu0 0.0
      %1695 = vmatprep.subr.mxu0 0.0
      %1696 = vmatpush2.msra.mxu0 0.0
      %1697 = vmatprep.subr.mxu0 0.0
      %1698 = vmatpush2.msra.mxu0 0.0
      %1699 = vmatprep.subr.mxu0 0.0
      %1700 = vmatpush2.msra.mxu0 0.0
      %1701 = vmatprep.subr.mxu0 0.0
      %1702 = vmatpush2.msra.mxu0 0.0
      %1703 = vmatprep.subr.mxu0 0.0
      %1704 = vmatpush2.msra.mxu0 0.0
      %1705 = vmatprep.subr.mxu0 0.0
      %1706 = vmatpush2.msra.mxu0 0.0
      %1707 = vmatprep.subr.mxu0 0.0
      %1708 = vmatpush2.msra.mxu0 0.0
      %1709 = vmatprep.subr.mxu0 0.0
      %1710 = vmatpush2.msra.mxu0 0.0
      %1711 = vmatprep.subr.mxu0 0.0
      %1712 = vmatpush2.msra.mxu0 0.0
      %1713 = vmatprep.subr.mxu0 0.0
      %1714 = vmatpush2.msra.mxu0 0.0
      %1715 = vmatprep.subr.mxu0 0.0
      %1716 = vmatpush2.msra.mxu0 0.0
      %1717 = vmatprep.subr.mxu0 0.0
      %1718 = vmatpush2.msra.mxu0 0.0
      %1719 = vmatprep.subr.mxu0 0.0
      %1720 = vmatpush2.msra.mxu0 0.0
      %1721 = vmatprep.mubr.f32.mxu0 0.0
      %1722 = vmatmul.mubr.f32.gmra.mxu0 %v1652
      %v1723 = vpop.f32.mrf.mxu0
      %v1724 = vadd.f32 0.0, %v1723
      %v1725 = vpop.f32.mrf.mxu0
      %1726 = vmatprep.mubr.f32.mxu0 0.0
      %1727 = vmatmul.mubr.f32.gmra.mxu0 %v1655
      %v1728 = vpop.f32.mrf.mxu0
      %v1729 = vadd.f32 0.0, %v1728
      %v1730 = vpop.f32.mrf.mxu0
      %1731 = vdwg.mxu0
      %v1732 = vxor.u32 %v1724, 2147483648
      %v1733 = vxor.u32 %v1729, 2147483648
      %v1734 = vmul.f32 %v1732, 1.442695
      %v1735 = vpow.pop %v1734
      %v1736 = vmul.f32 %v1733, 1.442695
      %v1737 = vpow.pop %v1736
      %v1738 = vadd.f32 %v1735, 1.0
      %v1739 = vadd.f32 %v1737, 1.0
      %v1740 = vrcp.pop %v1738
      %v1741 = vmul.f32 1.0, %v1740
      %v1742 = vrcp.pop %v1739
      %v1743 = vmul.f32 1.0, %v1742
      %v1744 = vmul.f32 %v1724, %v1741
      %v1745 = vmul.f32 %v1729, %v1743
      %1748 = vrot.lane.b32.xlu0 %v1724, 64
      %v1749 = vpop.permute.xlu0 %1748
      %1750 = vrot.lane.b32.xlu0 %v1729, 64
      %v1751 = vpop.permute.xlu0 %1750
      %v1754 = vmul.f32 %v1744, %v1749
      %v1755 = vmul.f32 %v1745, %v1751
      %v1756 = vld [vmem:[%s432] sm:$0xff]
      %v1757 = vld [vmem:[%s432 + $0x8] sm:$0xff]
      %v1758 = vld [vmem:[%s432 + $0x10] sm:$0xff]
      %v1759 = vld [vmem:[%s432 + $0x18] sm:$0xff]
      %v1760 = vld [vmem:[%s432 + $0x20] sm:$0xff]
      %v1761 = vld [vmem:[%s432 + $0x28] sm:$0xff]
      %v1762 = vld [vmem:[%s432 + $0x30] sm:$0xff]
      %v1763 = vld [vmem:[%s432 + $0x38] sm:$0xff]
      %vm1764 = vcmask 523264
      %v1766 = vsel %vm1764, %v1754, 0
      %v1769 = vsel %vm1764, %v1755, 0
      %1771 = vmatprep.subr.mxu0 0.0
      %1772 = vmatpush1.msra.mxu0 0.0
      %1773 = vmatprep.subr.mxu0 0.0
      %1774 = vmatpush1.msra.mxu0 0.0
      %1775 = vmatprep.subr.mxu0 0.0
      %1776 = vmatpush1.msra.mxu0 0.0
      %1777 = vmatprep.subr.mxu0 0.0
      %1778 = vmatpush1.msra.mxu0 0.0
      %1779 = vmatprep.subr.mxu0 0.0
      %1780 = vmatpush1.msra.mxu0 0.0
      %1781 = vmatprep.subr.mxu0 0.0
      %1782 = vmatpush1.msra.mxu0 0.0
      %1783 = vmatprep.subr.mxu0 0.0
      %1784 = vmatpush1.msra.mxu0 0.0
      %1785 = vmatprep.subr.mxu0 0.0
      %1786 = vmatpush1.msra.mxu0 0.0
      %1787 = vmatprep.subr.mxu0 0.0
      %1788 = vmatpush1.msra.mxu0 %v1763
      %1789 = vmatprep.subr.mxu0 0.0
      %1790 = vmatpush1.msra.mxu0 %v1762
      %1791 = vmatprep.subr.mxu0 0.0
      %1792 = vmatpush1.msra.mxu0 %v1761
      %1793 = vmatprep.subr.mxu0 0.0
      %1794 = vmatpush1.msra.mxu0 %v1760
      %1795 = vmatprep.subr.mxu0 0.0
      %1796 = vmatpush1.msra.mxu0 %v1759
      %1797 = vmatprep.subr.mxu0 0.0
      %1798 = vmatpush1.msra.mxu0 %v1758
      %1799 = vmatprep.subr.mxu0 0.0
      %1800 = vmatpush1.msra.mxu0 %v1757
      %1801 = vmatprep.subr.mxu0 0.0
      %1802 = vmatpush1.msra.mxu0 %v1756
      %1803 = vmatprep.subr.mxu0 0.0
      %1804 = vmatpush2.msra.mxu0 0.0
      %1805 = vmatprep.subr.mxu0 0.0
      %1806 = vmatpush2.msra.mxu0 0.0
      %1807 = vmatprep.subr.mxu0 0.0
      %1808 = vmatpush2.msra.mxu0 0.0
      %1809 = vmatprep.subr.mxu0 0.0
      %1810 = vmatpush2.msra.mxu0 0.0
      %1811 = vmatprep.subr.mxu0 0.0
      %1812 = vmatpush2.msra.mxu0 0.0
      %1813 = vmatprep.subr.mxu0 0.0
      %1814 = vmatpush2.msra.mxu0 0.0
      %1815 = vmatprep.subr.mxu0 0.0
      %1816 = vmatpush2.msra.mxu0 0.0
      %1817 = vmatprep.subr.mxu0 0.0
      %1818 = vmatpush2.msra.mxu0 0.0
      %1819 = vmatprep.subr.mxu0 0.0
      %1820 = vmatpush2.msra.mxu0 0.0
      %1821 = vmatprep.subr.mxu0 0.0
      %1822 = vmatpush2.msra.mxu0 0.0
      %1823 = vmatprep.subr.mxu0 0.0
      %1824 = vmatpush2.msra.mxu0 0.0
      %1825 = vmatprep.subr.mxu0 0.0
      %1826 = vmatpush2.msra.mxu0 0.0
      %1827 = vmatprep.subr.mxu0 0.0
      %1828 = vmatpush2.msra.mxu0 0.0
      %1829 = vmatprep.subr.mxu0 0.0
      %1830 = vmatpush2.msra.mxu0 0.0
      %1831 = vmatprep.subr.mxu0 0.0
      %1832 = vmatpush2.msra.mxu0 0.0
      %1833 = vmatprep.subr.mxu0 0.0
      %1834 = vmatpush2.msra.mxu0 0.0
      %1835 = vmatprep.mubr.f32.mxu0 0.0
      %1836 = vmatmul.mubr.f32.gmra.mxu0 %v1766
      %v1837 = vpop.f32.mrf.mxu0
      %v1838 = vadd.f32 0.0, %v1837
      %v1839 = vpop.f32.mrf.mxu0
      %1840 = vmatprep.mubr.f32.mxu0 0.0
      %1841 = vmatmul.mubr.f32.gmra.mxu0 %v1769
      %v1842 = vpop.f32.mrf.mxu0
      %v1843 = vadd.f32 0.0, %v1842
      %v1844 = vpop.f32.mrf.mxu0
      %1845 = vdwg.mxu0
      %v1846 = vadd.f32 %v1620, %v1838
      %v1847 = vadd.f32 %v1621, %v1843
      %1848 = vst.msk [vmem:[#allocation2] sm:$0xff] %vm446, %v1846
      %1849 = vst.msk [vmem:[#allocation2 + $0x8] sm:$0xff] %vm446, %v1847
      %p1850 = scmp.eq.s32.totalorder %s21, 1
      // Predicated region
      $region65: #{smollm2_forward.2} parent=59 // pred_check
        %p1851 = pneg %p1850
      $region66: #{smollm2_forward.2} parent=59 // pred_check_branch
        %1853 = sbr.rel (%p1851) target = $region68
      $region67: #{smollm2_forward.2} parent=59 // pred_region
        %v1854 = vmul.f32 %v1846, %v1846
        %v1855 = vmul.f32 %v1847, %v1847
        %v1856 = vsel %vm446, %v1854, 0.0
        %1857 = vadd.xlane.f32.xlu0 %v1856
        %v1858 = vpop.xlane.xlu0 %1857
        %v1859 = vsel %vm446, %v1855, 0.0
        %1860 = vadd.xlane.f32.xlu0 %v1859
        %v1861 = vpop.xlane.xlu0 %1860
        %v1862 = vmul.f32 %v1858, %v453
        %v1863 = vmul.f32 %v1861, %v453
        %v1864 = vadd.f32 %v1862, 1e-05
        %v1865 = vadd.f32 %v1863, 1e-05
        %v1866 = vrsqrt.pop %v1864
        %v1867 = vrsqrt.pop %v1865
        %v1868 = vmul.f32 %v1846, %v1866
        %v1869 = vmul.f32 %v1847, %v1867
        %v1870 = vld [vmem:[%s9] sm:$0x1]
        %v1872 = vlaneseq
        %v1873 = vshrl.u32 %v1872, 7
        %v1874 = vsub.s32 0, %v1873
        %v1875 = vrot.slane %v1870, %v1874
        %v1877 = vmul.f32 %v1868, %v1875
        %v1878 = vmul.f32 %v1869, %v1875
        %1879 = vst.msk [vmem:[%s10] sm:$0xff] %vm446, %v1877
        %1880 = vst.msk [vmem:[%s10 + $0x8] sm:$0xff] %vm446, %v1878
      $region68: #{smollm2_forward.2} parent=59 // pred_fallthru
        _
      // Predicated region
      $region69: #{smollm2_forward.2} parent=59 // pred_check
        %p1881 = pneg %p274
      $region70: #{smollm2_forward.2} parent=59 // pred_check_branch
        %1883 = sbr.rel (%p1881) target = $region72
      $region71: #{smollm2_forward.2} parent=59 // pred_region
        _
      $region72: #{smollm2_forward.2} parent=59 // pred_fallthru
        _
      // Predicated region
      $region73: #{smollm2_forward.2} parent=59 // pred_check
        %p1884 = pneg %p274
      $region74: #{smollm2_forward.2} parent=59 // pred_check_branch
        %1886 = sbr.rel (%p1884) target = $region76
      $region75: #{smollm2_forward.2} parent=59 // pred_region
        _
      $region76: #{smollm2_forward.2} parent=59 // pred_fallthru
        _
    $region60: #{smollm2_forward.2} parent=5 // pred_fallthru
      _
    %p1887 = scmp.le.s32.totalorder 2, %s16
    // Predicated region
    $region77: #{smollm2_forward.2} parent=5 // pred_check
      %p1888 = pneg %p1887
    $region78: #{smollm2_forward.2} parent=5 // pred_check_branch
      %1890 = sbr.rel (%p1888) target = $region80
    $region79: #{smollm2_forward.2} parent=5 // pred_region
      %s1891 = ssub.s32 %s16, 2
    $region80: #{smollm2_forward.2} parent=5 // pred_fallthru
      _
  $region6: #{smollm2_forward.2} parent=0 // loop_footer
    %s20 = sadd.s32 1, %s16
  $region7: #{smollm2_forward.2} parent=0 // loop_footer_branch
    %15 = sbr.rel target = $region3
  $region8: #{smollm2_forward.2} parent=0 // loop_exit
    _

</llo_original>
